<compile_context>
chip_gen: v7x
topology: tpu7x:2x2x1
jax: 0.10.0
libtpu: 0.0.40
codegen_flags: <defaults>
</compile_context>

<pallas_src>
import jax
import jax.numpy as jnp
from jax.experimental import pallas as pl
from jax.experimental.pallas import tpu as pltpu


# ----------------------------- model dims -----------------------------------
T = 8            # tgt_len == src_len (graph nodes incl. virtual token)
B = 2            # batch
E = 128          # embedding_dim (lane-dense)
H = 4            # num_attention_heads
DH = E // H      # head_dim = 32
F = 128          # ffn_embedding_dim (== E so out/fc1/fc2 stack into one (3,E,E))
LN_EPS = 1e-5
SCALING = DH ** -0.5


def _layer_norm(x, gamma, beta):
    """PyTorch nn.LayerNorm over the last dim (biased variance, eps=1e-5)."""
    mu = jnp.mean(x, axis=-1, keepdims=True)
    xc = x - mu
    var = jnp.mean(xc * xc, axis=-1, keepdims=True)
    return xc * jax.lax.rsqrt(var + LN_EPS) * gamma + beta


# ------------------------------ Pallas kernel --------------------------------
def encoder_layer_kernel(x_ref, attn_bias_ref, w_qkv_ref, b_qkv_ref,
                         w_rest_ref, vec_ref, out_ref):
    x = x_ref[...]                                               # (T, B, E)
    # single in-kernel relayout to batch-major rows (replaces wrapper transpose)
    x2 = jnp.concatenate([x[:, b, :] for b in range(B)], axis=0)  # (B*T, E)

    vec = vec_ref[...]                                           # (7, E)
    bo, b1, b2 = vec[0:1], vec[1:2], vec[2:3]
    g1, be1, g2, be2 = vec[3:4], vec[4:5], vec[5:6], vec[6:7]

    # --- fused q/k/v projection (one wide MXU matmul, f32 accumulate) ---
    # SCALING (head_dim**-0.5) is already folded into the q columns/bias.
    qkv = jnp.dot(x2, w_qkv_ref[...],
                  preferred_element_type=jnp.float32) + b_qkv_ref[...]   # (B*T, 3E)

    # --- head-batched attention; leading batch index n = b*H + h
    #     (matches PyTorch's (tgt, bsz*heads, head_dim) view ordering) ---
    def head(col0, b, h):
        return qkv[b * T:(b + 1) * T, col0 + h * DH: col0 + (h + 1) * DH]  # (T, DH)

    qh = jnp.stack([head(0,     b, h) for b in range(B) for h in range(H)], axis=0)
    kh = jnp.stack([head(E,     b, h) for b in range(B) for h in range(H)], axis=0)
    vh = jnp.stack([head(2 * E, b, h) for b in range(B) for h in range(H)], axis=0)

    s = jnp.einsum('ntd,nsd->nts', qh, kh,
                   preferred_element_type=jnp.float32)           # (B*H, T, T)
    s = s + attn_bias_ref[...].reshape(B * H, T, T)
    # TODO(synk): key_padding_mask / attn_mask are None in this config; if needed
    # they fold into attn_bias as additive -inf terms.
    m = jnp.max(s, axis=-1, keepdims=True)
    e = jnp.exp(s - m)
    # exact reciprocal kept so the 1e-4 fidelity check holds (approx=True is the
    # EUP-slot-free variant).
    p = e * pl.reciprocal(jnp.sum(e, axis=-1, keepdims=True), approx=False)
    o = jnp.einsum('nts,nsd->ntd', p, vh,
                   preferred_element_type=jnp.float32)           # (B*H, T, DH)

    # merge heads back onto lanes, batch-major rows
    attn = jnp.concatenate(
        [jnp.concatenate([o[b * H + h] for h in range(H)], axis=-1) for b in range(B)],
        axis=0)                                                  # (B*T, E)

    # --- out projection, residual, self_attn_layer_norm (post-LN) ---
    attn = jnp.dot(attn, w_rest_ref[0], preferred_element_type=jnp.float32) + bo
    x1 = _layer_norm(x2 + attn, g1, be1)

    # --- FFN: fc1 -> gelu -> fc2, residual, final_layer_norm ---
    hdn = jax.nn.gelu(jnp.dot(x1, w_rest_ref[1],
                              preferred_element_type=jnp.float32) + b1)
    hdn = jnp.dot(hdn, w_rest_ref[2], preferred_element_type=jnp.float32) + b2
    y = _layer_norm(x1 + hdn, g2, be2)

    # single lane-dense store back in (T, B, E) layout
    out_ref[...] = jnp.stack([y[b * T:(b + 1) * T, :] for b in range(B)], axis=1)


# ------------------------------- wrapper --------------------------------------
def encoder_layer_forward(input_nodes, self_attn_bias, packed):
    """input_nodes: (T, B, E) like the PyTorch module; self_attn_bias: (B, H, T, T).

    Returns (output (T, B, E), attn_weights=None)  [need_weights=False].
    No wrapper-side transposes / reshapes: everything happens inside one
    gridless, fully-VMEM-resident pallas_call.
    """
    vmem = pl.BlockSpec(memory_space=pltpu.MemorySpace.VMEM)
    out = pl.pallas_call(
        encoder_layer_kernel,
        out_shape=jax.ShapeDtypeStruct((T, B, E), jnp.float32),
        in_specs=[vmem, vmem, vmem, vmem, vmem, vmem],
        out_specs=vmem,
    )(input_nodes, self_attn_bias, packed["w_qkv"], packed["b_qkv"],
      packed["w_rest"], packed["vec"])
    # TODO(synk): for L stacked layers, fuse with grid=(L,) over an (L,...) weight
    # stack ("arbitrary") so layer l+1 weights pipeline behind layer l compute;
    # on v7x add a "parallel" axis over independent graphs to use both TCs.
    return out, None


# ------------------------- deterministic parameter init ----------------------
def init_params(key):
    """Natural (per-module) parameters, mirroring the PyTorch layer."""
    kq, kk, kv, ko, k1, k2, kb, kln = jax.random.split(key, 8)
    s = E ** -0.5
    nat = {
        "wq": s * jax.random.normal(kq, (E, E), jnp.float32),   # (in, out) layout
        "wk": s * jax.random.normal(kk, (E, E), jnp.float32),
        "wv": s * jax.random.normal(kv, (E, E), jnp.float32),
        "wo": s * jax.random.normal(ko, (E, E), jnp.float32),
        "w1": s * jax.random.normal(k1, (E, F), jnp.float32),
        "w2": s * jax.random.normal(k2, (F, E), jnp.float32),
    }
    bs = 0.05 * jax.random.normal(kb, (6, E), jnp.float32)
    nat.update(bq=bs[0], bk=bs[1], bv=bs[2], bo=bs[3], b1=bs[4], b2=bs[5])
    kg1, kb1, kg2, kb2 = jax.random.split(kln, 4)
    nat.update(
        g1=1.0 + 0.1 * jax.random.normal(kg1, (E,), jnp.float32),
        be1=0.1 * jax.random.normal(kb1, (E,), jnp.float32),
        g2=1.0 + 0.1 * jax.random.normal(kg2, (E,), jnp.float32),
        be2=0.1 * jax.random.normal(kb2, (E,), jnp.float32),
    )
    return nat


def pack_params(nat):
    """One-time parameter transform into the kernel's fused/stacked operands."""
    assert F == E, "w_rest stacking assumes ffn_embedding_dim == embedding_dim"
    # fused QKV weight/bias with head_dim**-0.5 folded into the q part
    w_qkv = jnp.concatenate([nat["wq"] * SCALING, nat["wk"], nat["wv"]], axis=1)  # (E, 3E)
    b_qkv = jnp.concatenate([nat["bq"] * SCALING, nat["bk"], nat["bv"]])[None, :]  # (1, 3E)
    w_rest = jnp.stack([nat["wo"], nat["w1"], nat["w2"]])                          # (3, E, E)
    vec = jnp.stack([nat["bo"], nat["b1"], nat["b2"],
                     nat["g1"], nat["be1"], nat["g2"], nat["be2"]])                # (7, E)
    return {"w_qkv": w_qkv, "b_qkv": b_qkv, "w_rest": w_rest, "vec": vec}


# ------------------------------ pure-JAX reference ---------------------------
def encoder_layer_reference(input_nodes, self_attn_bias, nat):
    """Mirrors the PyTorch forward exactly (post-LN, eval, unfused params)."""
    hi = jax.lax.Precision.HIGHEST
    x = input_nodes                                               # (T, B, E)

    q = (jnp.einsum('tbe,ef->tbf', x, nat["wq"], precision=hi) + nat["bq"]) * SCALING
    k = jnp.einsum('tbe,ef->tbf', x, nat["wk"], precision=hi) + nat["bk"]
    v = jnp.einsum('tbe,ef->tbf', x, nat["wv"], precision=hi) + nat["bv"]

    qh = jnp.transpose(q.reshape(T, B * H, DH), (1, 0, 2))        # (B*H, T, DH)
    kh = jnp.transpose(k.reshape(T, B * H, DH), (1, 0, 2))
    vh = jnp.transpose(v.reshape(T, B * H, DH), (1, 0, 2))

    w = jnp.einsum('ntd,nsd->nts', qh, kh, precision=hi)
    w = w + self_attn_bias.reshape(B * H, T, T)
    p = jax.nn.softmax(w, axis=-1)
    o = jnp.einsum('nts,nsd->ntd', p, vh, precision=hi)           # (B*H, T, DH)
    attn = jnp.transpose(o, (1, 0, 2)).reshape(T, B, E)
    attn = jnp.einsum('tbe,ef->tbf', attn, nat["wo"], precision=hi) + nat["bo"]

    x1 = _layer_norm(x + attn, nat["g1"], nat["be1"])
    hdn = jax.nn.gelu(jnp.einsum('tbe,ef->tbf', x1, nat["w1"], precision=hi) + nat["b1"])
    hdn = jnp.einsum('tbf,fe->tbe', hdn, nat["w2"], precision=hi) + nat["b2"]
    y = _layer_norm(x1 + hdn, nat["g2"], nat["be2"])
    return y


# ------------------------------------ main ------------------------------------
if __name__ == "__main__":
    key = jax.random.PRNGKey(0)
    kx, kb_, kp = jax.random.split(key, 3)

    input_nodes = jax.random.normal(kx, (T, B, E), jnp.float32)          # (tgt, bsz, embed)
    self_attn_bias = 0.5 * jax.random.normal(kb_, (B, H, T, T), jnp.float32)

    nat_params = init_params(kp)
    packed = pack_params(nat_params)

    out, attn_weights = encoder_layer_forward(input_nodes, self_attn_bias, packed)
    out = jax.block_until_ready(out)

    ref = encoder_layer_reference(input_nodes, self_attn_bias, nat_params)
    assert out.shape == (T, B, E)
    assert attn_weights is None
    assert jnp.allclose(out, ref, atol=1e-4, rtol=1e-4), "kernel/reference mismatch"

    print("KERNEL_OK")
</pallas_src>

<mosaic_0001>
module attributes {stable_mosaic.version = 11 : i64} {
  func.func @encoder_layer_kernel(%arg0: memref<8x2x128xf32, #tpu.memory_space<vmem>>, %arg1: memref<2x4x8x8xf32, #tpu.memory_space<vmem>>, %arg2: memref<128x384xf32, #tpu.memory_space<vmem>>, %arg3: memref<1x384xf32, #tpu.memory_space<vmem>>, %arg4: memref<3x128x128xf32, #tpu.memory_space<vmem>>, %arg5: memref<7x128xf32, #tpu.memory_space<vmem>>, %arg6: memref<8x2x128xf32, #tpu.memory_space<vmem>>) attributes {dimension_semantics = [], scalar_prefetch = 0 : i64, scratch_operands = 0 : i64, tpu.core_type = #tpu.core_type<tc>} {
    %c0 = arith.constant 0 : index
    %c0_0 = arith.constant 0 : index
    %c0_1 = arith.constant 0 : index
    %0 = vector.load %arg0[%c0, %c0_0, %c0_1] : memref<8x2x128xf32, #tpu.memory_space<vmem>>, vector<8x2x128xf32>
    %1 = vector.extract_strided_slice %0 {offsets = [0, 0, 0], sizes = [8, 1, 128], strides = [1, 1, 1]} : vector<8x2x128xf32> to vector<8x1x128xf32>
    %2 = vector.shape_cast %1 : vector<8x1x128xf32> to vector<8x128xf32>
    %3 = vector.extract_strided_slice %0 {offsets = [0, 1, 0], sizes = [8, 1, 128], strides = [1, 1, 1]} : vector<8x2x128xf32> to vector<8x1x128xf32>
    %4 = vector.shape_cast %3 : vector<8x1x128xf32> to vector<8x128xf32>
    %5 = tpu.concatenate %2, %4 in 0 : vector<8x128xf32>, vector<8x128xf32> -> vector<16x128xf32>
    %c0_2 = arith.constant 0 : index
    %c0_3 = arith.constant 0 : index
    %6 = vector.load %arg5[%c0_2, %c0_3] : memref<7x128xf32, #tpu.memory_space<vmem>>, vector<7x128xf32>
    %7 = vector.extract_strided_slice %6 {offsets = [0, 0], sizes = [1, 128], strides = [1, 1]} : vector<7x128xf32> to vector<1x128xf32>
    %8 = vector.extract_strided_slice %6 {offsets = [1, 0], sizes = [1, 128], strides = [1, 1]} : vector<7x128xf32> to vector<1x128xf32>
    %9 = vector.extract_strided_slice %6 {offsets = [2, 0], sizes = [1, 128], strides = [1, 1]} : vector<7x128xf32> to vector<1x128xf32>
    %10 = vector.extract_strided_slice %6 {offsets = [3, 0], sizes = [1, 128], strides = [1, 1]} : vector<7x128xf32> to vector<1x128xf32>
    %11 = vector.extract_strided_slice %6 {offsets = [4, 0], sizes = [1, 128], strides = [1, 1]} : vector<7x128xf32> to vector<1x128xf32>
    %12 = vector.extract_strided_slice %6 {offsets = [5, 0], sizes = [1, 128], strides = [1, 1]} : vector<7x128xf32> to vector<1x128xf32>
    %13 = vector.extract_strided_slice %6 {offsets = [6, 0], sizes = [1, 128], strides = [1, 1]} : vector<7x128xf32> to vector<1x128xf32>
    %c0_4 = arith.constant 0 : index
    %c0_5 = arith.constant 0 : index
    %14 = vector.load %arg2[%c0_4, %c0_5] : memref<128x384xf32, #tpu.memory_space<vmem>>, vector<128x384xf32>
    %cst = arith.constant dense<0.000000e+00> : vector<16x384xf32>
    %15 = tpu.matmul %5, %14, %cst {dimension_numbers = #tpu.dot_dimension_numbers<[1], [0], [0], [1], [0, 0, 1, 1], [], []>} : vector<16x128xf32>, vector<128x384xf32>, vector<16x384xf32> -> vector<16x384xf32>
    %c0_6 = arith.constant 0 : index
    %c0_7 = arith.constant 0 : index
    %16 = vector.load %arg3[%c0_6, %c0_7] : memref<1x384xf32, #tpu.memory_space<vmem>>, vector<1x384xf32>
    %17 = vector.broadcast %16 : vector<1x384xf32> to vector<16x384xf32>
    %18 = arith.addf %15, %17 : vector<16x384xf32>
    %19 = vector.extract_strided_slice %18 {offsets = [0, 0], sizes = [8, 32], strides = [1, 1]} : vector<16x384xf32> to vector<8x32xf32>
    %20 = vector.extract_strided_slice %18 {offsets = [0, 32], sizes = [8, 32], strides = [1, 1]} : vector<16x384xf32> to vector<8x32xf32>
    %21 = vector.extract_strided_slice %18 {offsets = [0, 64], sizes = [8, 32], strides = [1, 1]} : vector<16x384xf32> to vector<8x32xf32>
    %22 = vector.extract_strided_slice %18 {offsets = [0, 96], sizes = [8, 32], strides = [1, 1]} : vector<16x384xf32> to vector<8x32xf32>
    %23 = vector.extract_strided_slice %18 {offsets = [8, 0], sizes = [8, 32], strides = [1, 1]} : vector<16x384xf32> to vector<8x32xf32>
    %24 = vector.extract_strided_slice %18 {offsets = [8, 32], sizes = [8, 32], strides = [1, 1]} : vector<16x384xf32> to vector<8x32xf32>
    %25 = vector.extract_strided_slice %18 {offsets = [8, 64], sizes = [8, 32], strides = [1, 1]} : vector<16x384xf32> to vector<8x32xf32>
    %26 = vector.extract_strided_slice %18 {offsets = [8, 96], sizes = [8, 32], strides = [1, 1]} : vector<16x384xf32> to vector<8x32xf32>
    %27 = vector.shape_cast %19 : vector<8x32xf32> to vector<1x8x32xf32>
    %28 = vector.shape_cast %20 : vector<8x32xf32> to vector<1x8x32xf32>
    %29 = vector.shape_cast %21 : vector<8x32xf32> to vector<1x8x32xf32>
    %30 = vector.shape_cast %22 : vector<8x32xf32> to vector<1x8x32xf32>
    %31 = vector.shape_cast %23 : vector<8x32xf32> to vector<1x8x32xf32>
    %32 = vector.shape_cast %24 : vector<8x32xf32> to vector<1x8x32xf32>
    %33 = vector.shape_cast %25 : vector<8x32xf32> to vector<1x8x32xf32>
    %34 = vector.shape_cast %26 : vector<8x32xf32> to vector<1x8x32xf32>
    %35 = tpu.concatenate %27, %28, %29, %30, %31, %32, %33, %34 in 0 : vector<1x8x32xf32>, vector<1x8x32xf32>, vector<1x8x32xf32>, vector<1x8x32xf32>, vector<1x8x32xf32>, vector<1x8x32xf32>, vector<1x8x32xf32>, vector<1x8x32xf32> -> vector<8x8x32xf32>
    %36 = vector.extract_strided_slice %18 {offsets = [0, 128], sizes = [8, 32], strides = [1, 1]} : vector<16x384xf32> to vector<8x32xf32>
    %37 = vector.extract_strided_slice %18 {offsets = [0, 160], sizes = [8, 32], strides = [1, 1]} : vector<16x384xf32> to vector<8x32xf32>
    %38 = vector.extract_strided_slice %18 {offsets = [0, 192], sizes = [8, 32], strides = [1, 1]} : vector<16x384xf32> to vector<8x32xf32>
    %39 = vector.extract_strided_slice %18 {offsets = [0, 224], sizes = [8, 32], strides = [1, 1]} : vector<16x384xf32> to vector<8x32xf32>
    %40 = vector.extract_strided_slice %18 {offsets = [8, 128], sizes = [8, 32], strides = [1, 1]} : vector<16x384xf32> to vector<8x32xf32>
    %41 = vector.extract_strided_slice %18 {offsets = [8, 160], sizes = [8, 32], strides = [1, 1]} : vector<16x384xf32> to vector<8x32xf32>
    %42 = vector.extract_strided_slice %18 {offsets = [8, 192], sizes = [8, 32], strides = [1, 1]} : vector<16x384xf32> to vector<8x32xf32>
    %43 = vector.extract_strided_slice %18 {offsets = [8, 224], sizes = [8, 32], strides = [1, 1]} : vector<16x384xf32> to vector<8x32xf32>
    %44 = vector.shape_cast %36 : vector<8x32xf32> to vector<1x8x32xf32>
    %45 = vector.shape_cast %37 : vector<8x32xf32> to vector<1x8x32xf32>
    %46 = vector.shape_cast %38 : vector<8x32xf32> to vector<1x8x32xf32>
    %47 = vector.shape_cast %39 : vector<8x32xf32> to vector<1x8x32xf32>
    %48 = vector.shape_cast %40 : vector<8x32xf32> to vector<1x8x32xf32>
    %49 = vector.shape_cast %41 : vector<8x32xf32> to vector<1x8x32xf32>
    %50 = vector.shape_cast %42 : vector<8x32xf32> to vector<1x8x32xf32>
    %51 = vector.shape_cast %43 : vector<8x32xf32> to vector<1x8x32xf32>
    %52 = tpu.concatenate %44, %45, %46, %47, %48, %49, %50, %51 in 0 : vector<1x8x32xf32>, vector<1x8x32xf32>, vector<1x8x32xf32>, vector<1x8x32xf32>, vector<1x8x32xf32>, vector<1x8x32xf32>, vector<1x8x32xf32>, vector<1x8x32xf32> -> vector<8x8x32xf32>
    %53 = vector.extract_strided_slice %18 {offsets = [0, 256], sizes = [8, 32], strides = [1, 1]} : vector<16x384xf32> to vector<8x32xf32>
    %54 = vector.extract_strided_slice %18 {offsets = [0, 288], sizes = [8, 32], strides = [1, 1]} : vector<16x384xf32> to vector<8x32xf32>
    %55 = vector.extract_strided_slice %18 {offsets = [0, 320], sizes = [8, 32], strides = [1, 1]} : vector<16x384xf32> to vector<8x32xf32>
    %56 = vector.extract_strided_slice %18 {offsets = [0, 352], sizes = [8, 32], strides = [1, 1]} : vector<16x384xf32> to vector<8x32xf32>
    %57 = vector.extract_strided_slice %18 {offsets = [8, 256], sizes = [8, 32], strides = [1, 1]} : vector<16x384xf32> to vector<8x32xf32>
    %58 = vector.extract_strided_slice %18 {offsets = [8, 288], sizes = [8, 32], strides = [1, 1]} : vector<16x384xf32> to vector<8x32xf32>
    %59 = vector.extract_strided_slice %18 {offsets = [8, 320], sizes = [8, 32], strides = [1, 1]} : vector<16x384xf32> to vector<8x32xf32>
    %60 = vector.extract_strided_slice %18 {offsets = [8, 352], sizes = [8, 32], strides = [1, 1]} : vector<16x384xf32> to vector<8x32xf32>
    %61 = vector.shape_cast %53 : vector<8x32xf32> to vector<1x8x32xf32>
    %62 = vector.shape_cast %54 : vector<8x32xf32> to vector<1x8x32xf32>
    %63 = vector.shape_cast %55 : vector<8x32xf32> to vector<1x8x32xf32>
    %64 = vector.shape_cast %56 : vector<8x32xf32> to vector<1x8x32xf32>
    %65 = vector.shape_cast %57 : vector<8x32xf32> to vector<1x8x32xf32>
    %66 = vector.shape_cast %58 : vector<8x32xf32> to vector<1x8x32xf32>
    %67 = vector.shape_cast %59 : vector<8x32xf32> to vector<1x8x32xf32>
    %68 = vector.shape_cast %60 : vector<8x32xf32> to vector<1x8x32xf32>
    %69 = tpu.concatenate %61, %62, %63, %64, %65, %66, %67, %68 in 0 : vector<1x8x32xf32>, vector<1x8x32xf32>, vector<1x8x32xf32>, vector<1x8x32xf32>, vector<1x8x32xf32>, vector<1x8x32xf32>, vector<1x8x32xf32>, vector<1x8x32xf32> -> vector<8x8x32xf32>
    "tpu.trace_start"() <{level = 10 : i32, message = "ntd,nsd->nts"}> : () -> ()
    %cst_8 = arith.constant dense<0.000000e+00> : vector<8x8x8xf32>
    %70 = tpu.matmul %35, %52, %cst_8 {dimension_numbers = #tpu.dot_dimension_numbers<[2], [2], [1], [1], [0, 0, 0, 1, 1, 1], [0], [0]>} : vector<8x8x32xf32>, vector<8x8x32xf32>, vector<8x8x8xf32> -> vector<8x8x8xf32>
    "tpu.trace_stop"() : () -> ()
    %c0_9 = arith.constant 0 : index
    %c0_10 = arith.constant 0 : index
    %c0_11 = arith.constant 0 : index
    %c0_12 = arith.constant 0 : index
    %71 = vector.load %arg1[%c0_9, %c0_10, %c0_11, %c0_12] : memref<2x4x8x8xf32, #tpu.memory_space<vmem>>, vector<2x4x8x8xf32>
    %72 = vector.shape_cast %71 : vector<2x4x8x8xf32> to vector<8x8x8xf32>
    %73 = arith.addf %70, %72 : vector<8x8x8xf32>
    %cst_13 = arith.constant dense<0xFF800000> : vector<8x8xf32>
    %74 = vector.multi_reduction <maximumf>, %73, %cst_13 [2] : vector<8x8x8xf32> to vector<8x8xf32>
    %75 = vector.shape_cast %74 : vector<8x8xf32> to vector<8x8x1xf32>
    %76 = vector.broadcast %75 : vector<8x8x1xf32> to vector<8x8x8xf32>
    %77 = arith.subf %73, %76 : vector<8x8x8xf32>
    %78 = math.exp %77 : vector<8x8x8xf32>
    %cst_14 = arith.constant dense<0.000000e+00> : vector<8x8xf32>
    %79 = vector.multi_reduction <add>, %78, %cst_14 [2] : vector<8x8x8xf32> to vector<8x8xf32>
    %80 = vector.shape_cast %79 : vector<8x8xf32> to vector<8x8x1xf32>
    %81 = tpu.reciprocal %80 : vector<8x8x1xf32> -> vector<8x8x1xf32>
    %82 = vector.broadcast %81 : vector<8x8x1xf32> to vector<8x8x8xf32>
    %83 = arith.mulf %78, %82 : vector<8x8x8xf32>
    "tpu.trace_start"() <{level = 10 : i32, message = "nts,nsd->ntd"}> : () -> ()
    %cst_15 = arith.constant dense<0.000000e+00> : vector<8x8x32xf32>
    %84 = tpu.matmul %83, %69, %cst_15 {dimension_numbers = #tpu.dot_dimension_numbers<[2], [1], [1], [2], [0, 0, 0, 1, 1, 2], [0], [0]>} : vector<8x8x8xf32>, vector<8x8x32xf32>, vector<8x8x32xf32> -> vector<8x8x32xf32>
    "tpu.trace_stop"() : () -> ()
    %85 = vector.extract_strided_slice %84 {offsets = [0, 0, 0], sizes = [1, 8, 32], strides = [1, 1, 1]} : vector<8x8x32xf32> to vector<1x8x32xf32>
    %86 = vector.shape_cast %85 : vector<1x8x32xf32> to vector<8x32xf32>
    %87 = vector.extract_strided_slice %84 {offsets = [1, 0, 0], sizes = [1, 8, 32], strides = [1, 1, 1]} : vector<8x8x32xf32> to vector<1x8x32xf32>
    %88 = vector.shape_cast %87 : vector<1x8x32xf32> to vector<8x32xf32>
    %89 = vector.extract_strided_slice %84 {offsets = [2, 0, 0], sizes = [1, 8, 32], strides = [1, 1, 1]} : vector<8x8x32xf32> to vector<1x8x32xf32>
    %90 = vector.shape_cast %89 : vector<1x8x32xf32> to vector<8x32xf32>
    %91 = vector.extract_strided_slice %84 {offsets = [3, 0, 0], sizes = [1, 8, 32], strides = [1, 1, 1]} : vector<8x8x32xf32> to vector<1x8x32xf32>
    %92 = vector.shape_cast %91 : vector<1x8x32xf32> to vector<8x32xf32>
    %93 = tpu.concatenate %86, %88, %90, %92 in 1 : vector<8x32xf32>, vector<8x32xf32>, vector<8x32xf32>, vector<8x32xf32> -> vector<8x128xf32>
    %94 = vector.extract_strided_slice %84 {offsets = [4, 0, 0], sizes = [1, 8, 32], strides = [1, 1, 1]} : vector<8x8x32xf32> to vector<1x8x32xf32>
    %95 = vector.shape_cast %94 : vector<1x8x32xf32> to vector<8x32xf32>
    %96 = vector.extract_strided_slice %84 {offsets = [5, 0, 0], sizes = [1, 8, 32], strides = [1, 1, 1]} : vector<8x8x32xf32> to vector<1x8x32xf32>
    %97 = vector.shape_cast %96 : vector<1x8x32xf32> to vector<8x32xf32>
    %98 = vector.extract_strided_slice %84 {offsets = [6, 0, 0], sizes = [1, 8, 32], strides = [1, 1, 1]} : vector<8x8x32xf32> to vector<1x8x32xf32>
    %99 = vector.shape_cast %98 : vector<1x8x32xf32> to vector<8x32xf32>
    %100 = vector.extract_strided_slice %84 {offsets = [7, 0, 0], sizes = [1, 8, 32], strides = [1, 1, 1]} : vector<8x8x32xf32> to vector<1x8x32xf32>
    %101 = vector.shape_cast %100 : vector<1x8x32xf32> to vector<8x32xf32>
    %102 = tpu.concatenate %95, %97, %99, %101 in 1 : vector<8x32xf32>, vector<8x32xf32>, vector<8x32xf32>, vector<8x32xf32> -> vector<8x128xf32>
    %103 = tpu.concatenate %93, %102 in 0 : vector<8x128xf32>, vector<8x128xf32> -> vector<16x128xf32>
    %c0_16 = arith.constant 0 : index
    %c0_17 = arith.constant 0 : index
    %c0_18 = arith.constant 0 : index
    %104 = vector.load %arg4[%c0_16, %c0_17, %c0_18] : memref<3x128x128xf32, #tpu.memory_space<vmem>>, vector<1x128x128xf32>
    %105 = vector.shape_cast %104 : vector<1x128x128xf32> to vector<128x128xf32>
    %cst_19 = arith.constant dense<0.000000e+00> : vector<16x128xf32>
    %106 = tpu.matmul %103, %105, %cst_19 {dimension_numbers = #tpu.dot_dimension_numbers<[1], [0], [0], [1], [0, 0, 1, 1], [], []>} : vector<16x128xf32>, vector<128x128xf32>, vector<16x128xf32> -> vector<16x128xf32>
    %107 = vector.broadcast %7 : vector<1x128xf32> to vector<16x128xf32>
    %108 = arith.addf %106, %107 : vector<16x128xf32>
    %109 = arith.addf %5, %108 : vector<16x128xf32>
    %cst_20 = arith.constant dense<0.000000e+00> : vector<16xf32>
    %110 = vector.multi_reduction <add>, %109, %cst_20 [1] : vector<16x128xf32> to vector<16xf32>
    %111 = vector.shape_cast %110 : vector<16xf32> to vector<16x1xf32>
    %cst_21 = arith.constant 1.280000e+02 : f32
    %112 = vector.broadcast %cst_21 : f32 to vector<16x1xf32>
    %113 = arith.divf %111, %112 : vector<16x1xf32>
    %114 = vector.broadcast %113 : vector<16x1xf32> to vector<16x128xf32>
    %115 = arith.subf %109, %114 : vector<16x128xf32>
    %116 = arith.mulf %115, %115 : vector<16x128xf32>
    %cst_22 = arith.constant dense<0.000000e+00> : vector<16xf32>
    %117 = vector.multi_reduction <add>, %116, %cst_22 [1] : vector<16x128xf32> to vector<16xf32>
    %118 = vector.shape_cast %117 : vector<16xf32> to vector<16x1xf32>
    %cst_23 = arith.constant 1.280000e+02 : f32
    %119 = vector.broadcast %cst_23 : f32 to vector<16x1xf32>
    %120 = arith.divf %118, %119 : vector<16x1xf32>
    %cst_24 = arith.constant 9.99999974E-6 : f32
    %121 = vector.broadcast %cst_24 : f32 to vector<16x1xf32>
    %122 = arith.addf %120, %121 : vector<16x1xf32>
    %123 = math.rsqrt %122 : vector<16x1xf32>
    %124 = vector.broadcast %123 : vector<16x1xf32> to vector<16x128xf32>
    %125 = arith.mulf %115, %124 : vector<16x128xf32>
    %126 = vector.broadcast %10 : vector<1x128xf32> to vector<16x128xf32>
    %127 = arith.mulf %125, %126 : vector<16x128xf32>
    %128 = vector.broadcast %11 : vector<1x128xf32> to vector<16x128xf32>
    %129 = arith.addf %127, %128 : vector<16x128xf32>
    %c1 = arith.constant 1 : index
    %c0_25 = arith.constant 0 : index
    %c0_26 = arith.constant 0 : index
    %130 = vector.load %arg4[%c1, %c0_25, %c0_26] : memref<3x128x128xf32, #tpu.memory_space<vmem>>, vector<1x128x128xf32>
    %131 = vector.shape_cast %130 : vector<1x128x128xf32> to vector<128x128xf32>
    %cst_27 = arith.constant dense<0.000000e+00> : vector<16x128xf32>
    %132 = tpu.matmul %129, %131, %cst_27 {dimension_numbers = #tpu.dot_dimension_numbers<[1], [0], [0], [1], [0, 0, 1, 1], [], []>} : vector<16x128xf32>, vector<128x128xf32>, vector<16x128xf32> -> vector<16x128xf32>
    %133 = vector.broadcast %8 : vector<1x128xf32> to vector<16x128xf32>
    %134 = arith.addf %132, %133 : vector<16x128xf32>
    %135 = arith.mulf %134, %134 : vector<16x128xf32>
    %136 = arith.mulf %134, %135 : vector<16x128xf32>
    %cst_28 = arith.constant 4.471500e-02 : f32
    %137 = vector.broadcast %cst_28 : f32 to vector<16x128xf32>
    %138 = arith.mulf %137, %136 : vector<16x128xf32>
    %139 = arith.addf %134, %138 : vector<16x128xf32>
    %cst_29 = arith.constant 0.797884583 : f32
    %140 = vector.broadcast %cst_29 : f32 to vector<16x128xf32>
    %141 = arith.mulf %140, %139 : vector<16x128xf32>
    %142 = math.tanh %141 : vector<16x128xf32>
    %cst_30 = arith.constant 1.000000e+00 : f32
    %143 = vector.broadcast %cst_30 : f32 to vector<16x128xf32>
    %144 = arith.addf %143, %142 : vector<16x128xf32>
    %cst_31 = arith.constant 5.000000e-01 : f32
    %145 = vector.broadcast %cst_31 : f32 to vector<16x128xf32>
    %146 = arith.mulf %145, %144 : vector<16x128xf32>
    %147 = arith.mulf %134, %146 : vector<16x128xf32>
    %c2 = arith.constant 2 : index
    %c0_32 = arith.constant 0 : index
    %c0_33 = arith.constant 0 : index
    %148 = vector.load %arg4[%c2, %c0_32, %c0_33] : memref<3x128x128xf32, #tpu.memory_space<vmem>>, vector<1x128x128xf32>
    %149 = vector.shape_cast %148 : vector<1x128x128xf32> to vector<128x128xf32>
    %cst_34 = arith.constant dense<0.000000e+00> : vector<16x128xf32>
    %150 = tpu.matmul %147, %149, %cst_34 {dimension_numbers = #tpu.dot_dimension_numbers<[1], [0], [0], [1], [0, 0, 1, 1], [], []>} : vector<16x128xf32>, vector<128x128xf32>, vector<16x128xf32> -> vector<16x128xf32>
    %151 = vector.broadcast %9 : vector<1x128xf32> to vector<16x128xf32>
    %152 = arith.addf %150, %151 : vector<16x128xf32>
    %153 = arith.addf %129, %152 : vector<16x128xf32>
    %cst_35 = arith.constant dense<0.000000e+00> : vector<16xf32>
    %154 = vector.multi_reduction <add>, %153, %cst_35 [1] : vector<16x128xf32> to vector<16xf32>
    %155 = vector.shape_cast %154 : vector<16xf32> to vector<16x1xf32>
    %cst_36 = arith.constant 1.280000e+02 : f32
    %156 = vector.broadcast %cst_36 : f32 to vector<16x1xf32>
    %157 = arith.divf %155, %156 : vector<16x1xf32>
    %158 = vector.broadcast %157 : vector<16x1xf32> to vector<16x128xf32>
    %159 = arith.subf %153, %158 : vector<16x128xf32>
    %160 = arith.mulf %159, %159 : vector<16x128xf32>
    %cst_37 = arith.constant dense<0.000000e+00> : vector<16xf32>
    %161 = vector.multi_reduction <add>, %160, %cst_37 [1] : vector<16x128xf32> to vector<16xf32>
    %162 = vector.shape_cast %161 : vector<16xf32> to vector<16x1xf32>
    %cst_38 = arith.constant 1.280000e+02 : f32
    %163 = vector.broadcast %cst_38 : f32 to vector<16x1xf32>
    %164 = arith.divf %162, %163 : vector<16x1xf32>
    %cst_39 = arith.constant 9.99999974E-6 : f32
    %165 = vector.broadcast %cst_39 : f32 to vector<16x1xf32>
    %166 = arith.addf %164, %165 : vector<16x1xf32>
    %167 = math.rsqrt %166 : vector<16x1xf32>
    %168 = vector.broadcast %167 : vector<16x1xf32> to vector<16x128xf32>
    %169 = arith.mulf %159, %168 : vector<16x128xf32>
    %170 = vector.broadcast %12 : vector<1x128xf32> to vector<16x128xf32>
    %171 = arith.mulf %169, %170 : vector<16x128xf32>
    %172 = vector.broadcast %13 : vector<1x128xf32> to vector<16x128xf32>
    %173 = arith.addf %171, %172 : vector<16x128xf32>
    %174 = vector.extract_strided_slice %173 {offsets = [0, 0], sizes = [8, 128], strides = [1, 1]} : vector<16x128xf32> to vector<8x128xf32>
    %175 = vector.extract_strided_slice %173 {offsets = [8, 0], sizes = [8, 128], strides = [1, 1]} : vector<16x128xf32> to vector<8x128xf32>
    %176 = vector.shape_cast %174 : vector<8x128xf32> to vector<8x1x128xf32>
    %177 = vector.shape_cast %175 : vector<8x128xf32> to vector<8x1x128xf32>
    %178 = tpu.concatenate %176, %177 in 1 : vector<8x1x128xf32>, vector<8x1x128xf32> -> vector<8x2x128xf32>
    %c0_40 = arith.constant 0 : index
    %c0_41 = arith.constant 0 : index
    %c0_42 = arith.constant 0 : index
    %179 = vector.load %arg6[%c0_40, %c0_41, %c0_42] : memref<8x2x128xf32, #tpu.memory_space<vmem>>, vector<8x2x128xf32>
    tpu.vector_store %arg6[%c0_40, %c0_41, %c0_42], %178 {strides = array<i32>} : memref<8x2x128xf32, #tpu.memory_space<vmem>>, vector<8x2x128xf32>,
    return
  }
}

</mosaic_0001>

<llo_original>
// kernel: tpu_custom_call.1
$region0: #{tpu_custom_call.1}
  #allocation0 [shape = 'u32[]', space=smem, size = 0x4, offset = 0x4, fixed_abs, tag = 'smem constant byte address 0x4 - core index']
  #allocation1 [shape = 'u32[144,128]{1,0:T(1,128)}', space=vmem, size = 0x12000, scoped, tag = 'internal scratch']
  %s0 = inlined_call_operand.hbm [shape: f32[8,2,128], index: 0, kind: input, shape index: {}]
  %s1 = inlined_call_operand.hbm [shape: f32[2,4,8,8], index: 1, kind: input, shape index: {}]
  %s2 = inlined_call_operand.hbm [shape: f32[128,384], index: 2, kind: input, shape index: {}]
  %s3 = inlined_call_operand.vmem [shape: f32[1,384], index: 3, kind: input, shape index: {}]
  %s4 = inlined_call_operand.hbm [shape: f32[3,128,128], index: 4, kind: input, shape index: {}]
  %s5 = inlined_call_operand.vmem [shape: f32[7,128], index: 5, kind: input, shape index: {}]
  %s6 = inlined_call_operand.hbm [shape: f32[8,2,128], index: 6, kind: output, shape index: {}]
  %s7 = sld [smem:[#allocation0]]
  $region50: #{tpu_custom_call.1} parent=0
    _
  %s9 = ssub.s32 1, %s7
  %s10 = scalar_select 0, %s9, %s7
  $region1: #{tpu_custom_call.1} parent=0
    #allocation2 [shape = 'u8[8192]{0}', space=vmem, size = 0x2000, scoped, tag = 'input window, operand 0, single buffered']
    #allocation3 [shape = 's32[1]{0}', space=sflag, size = 0x4, scoped, tag = 'scoped memory for tpu_custom_call.1']
    #allocation4 [shape = 's32[1]{0}', space=sflag, size = 0x4, scoped, tag = 'scoped memory for tpu_custom_call.1']
    #allocation5 [shape = 'u8[32768]{0}', space=vmem, size = 0x8000, scoped, tag = 'input window, operand 1, single buffered']
    #allocation6 [shape = 's32[1]{0}', space=sflag, size = 0x4, scoped, tag = 'scoped memory for tpu_custom_call.1']
    #allocation7 [shape = 'u8[196608]{0}', space=vmem, size = 0x30000, scoped, tag = 'input window, operand 2, single buffered']
    #allocation8 [shape = 'u8[196608]{0}', space=vmem, size = 0x30000, scoped, tag = 'input window, operand 4, single buffered']
    #allocation9 [shape = 's32[1]{0}', space=sflag, size = 0x4, scoped, tag = 'scoped memory for tpu_custom_call.1']
    #allocation10 [shape = 'u8[8192]{0}', space=vmem, size = 0x2000, scoped, tag = 'output window, operand 0, single buffered']
    %11 = vsyncpa [#allocation3], 0
    %12 = vsyncpa [#allocation6], 0
    %13 = vsyncpa [#allocation9], 0
    %14 = vsyncpa [#allocation4], 0
    // Predicated region
    $region2: #{tpu_custom_call.1} parent=1 // pred_check
      _
    $region3: #{tpu_custom_call.1} parent=1 // pred_check_branch
      %16 = sbr.rel (0) target = $region5
    $region4: #{tpu_custom_call.1} parent=1 // pred_region
      %s18 = ssub.s32 256, 256
      %19 = vsyncadd [#allocation3], %s18
      %s20 = sshll.u32 [#allocation2], 4
      %s21 = int_to_ptr.vmem [resolvable:$true] %s20
      %26 = dma.hbm_to_vmem [thread:$0]  %s0, 256, %s21, [#allocation3], 32, 32, 2
    $region5: #{tpu_custom_call.1} parent=1 // pred_fallthru
      _
    // Predicated region
    $region6: #{tpu_custom_call.1} parent=1 // pred_check
      _
    $region7: #{tpu_custom_call.1} parent=1 // pred_check_branch
      %28 = sbr.rel (0) target = $region9
    $region8: #{tpu_custom_call.1} parent=1 // pred_region
      %s30 = ssub.s32 1024, 1024
      %31 = vsyncadd [#allocation6], %s30
      %s32 = sshll.u32 [#allocation5], 4
      %s33 = int_to_ptr.vmem [resolvable:$true] %s32
      %38 = dma.hbm_to_vmem [thread:$0]  %s1, 1024, %s33, [#allocation6], 128, 128, 8
    $region9: #{tpu_custom_call.1} parent=1 // pred_fallthru
      _
    // Predicated region
    $region10: #{tpu_custom_call.1} parent=1 // pred_check
      _
    $region11: #{tpu_custom_call.1} parent=1 // pred_check_branch
      %40 = sbr.rel (0) target = $region13
    $region12: #{tpu_custom_call.1} parent=1 // pred_region
      %s42 = ssub.s32 6144, 6144
      %43 = vsyncadd [#allocation6], %s42
      %s44 = sshll.u32 [#allocation7], 4
      %s45 = int_to_ptr.vmem [resolvable:$true] %s44
      %50 = dma.hbm_to_vmem [thread:$0]  %s2, 6144, %s45, [#allocation6], 384, 384, 24
    $region13: #{tpu_custom_call.1} parent=1 // pred_fallthru
      _
    // Predicated region
    $region14: #{tpu_custom_call.1} parent=1 // pred_check
      _
    $region15: #{tpu_custom_call.1} parent=1 // pred_check_branch
      %52 = sbr.rel (0) target = $region17
    $region16: #{tpu_custom_call.1} parent=1 // pred_region
      _
    $region17: #{tpu_custom_call.1} parent=1 // pred_fallthru
      _
    // Predicated region
    $region18: #{tpu_custom_call.1} parent=1 // pred_check
      _
    $region19: #{tpu_custom_call.1} parent=1 // pred_check_branch
      %54 = sbr.rel (0) target = $region21
    $region20: #{tpu_custom_call.1} parent=1 // pred_region
      %s56 = ssub.s32 6144, 6144
      %57 = vsyncadd [#allocation9], %s56
      %s58 = sshll.u32 [#allocation8], 4
      %s59 = int_to_ptr.vmem [resolvable:$true] %s58
      %64 = dma.hbm_to_vmem [thread:$0]  %s4, 6144, %s59, [#allocation9], 128, 128, 8
    $region21: #{tpu_custom_call.1} parent=1 // pred_fallthru
      _
    // Predicated region
    $region22: #{tpu_custom_call.1} parent=1 // pred_check
      _
    $region23: #{tpu_custom_call.1} parent=1 // pred_check_branch
      %66 = sbr.rel (0) target = $region25
    $region24: #{tpu_custom_call.1} parent=1 // pred_region
      _
    $region25: #{tpu_custom_call.1} parent=1 // pred_fallthru
      _
    // Predicated region
    $region26: #{tpu_custom_call.1} parent=1 // pred_check
      _
    $region27: #{tpu_custom_call.1} parent=1 // pred_check_branch
      %68 = sbr.rel (0) target = $region29
    $region28: #{tpu_custom_call.1} parent=1 // pred_region
      %69 = dma.done [#allocation3], 256
    $region29: #{tpu_custom_call.1} parent=1 // pred_fallthru
      _
    // Predicated region
    $region30: #{tpu_custom_call.1} parent=1 // pred_check
      _
    $region31: #{tpu_custom_call.1} parent=1 // pred_check_branch
      %71 = sbr.rel (0) target = $region33
    $region32: #{tpu_custom_call.1} parent=1 // pred_region
      %72 = dma.done [#allocation6], 1024
    $region33: #{tpu_custom_call.1} parent=1 // pred_fallthru
      _
    // Predicated region
    $region34: #{tpu_custom_call.1} parent=1 // pred_check
      _
    $region35: #{tpu_custom_call.1} parent=1 // pred_check_branch
      %74 = sbr.rel (0) target = $region37
    $region36: #{tpu_custom_call.1} parent=1 // pred_region
      %75 = dma.done [#allocation6], 6144
    $region37: #{tpu_custom_call.1} parent=1 // pred_fallthru
      _
    // Predicated region
    $region38: #{tpu_custom_call.1} parent=1 // pred_check
      _
    $region39: #{tpu_custom_call.1} parent=1 // pred_check_branch
      %77 = sbr.rel (0) target = $region41
    $region40: #{tpu_custom_call.1} parent=1 // pred_region
      %78 = dma.done [#allocation9], 6144
    $region41: #{tpu_custom_call.1} parent=1 // pred_fallthru
      _
    %v79 = vld [vmem:[#allocation2] sm:$0x3]
    %v80 = vld [vmem:[#allocation2 + $0x2] sm:$0x3]
    %v81 = vld [vmem:[#allocation2 + $0x4] sm:$0x3]
    %v82 = vld [vmem:[#allocation2 + $0x6] sm:$0x3]
    %v83 = vld [vmem:[#allocation2 + $0x8] sm:$0x3]
    %v84 = vld [vmem:[#allocation2 + $0xa] sm:$0x3]
    %v85 = vld [vmem:[#allocation2 + $0xc] sm:$0x3]
    %v86 = vld [vmem:[#allocation2 + $0xe] sm:$0x3]
    %v95 = vrot.slane %v80, 7
    %vm96 = vcmask 1041409
    %v97 = vsel %vm96, %v95, %v79
    %v98 = vrot.slane %v81, 6
    %vm99 = vcmask 1042434
    %v100 = vsel %vm99, %v98, %v97
    %v101 = vrot.slane %v82, 5
    %vm102 = vcmask 1043459
    %v103 = vsel %vm102, %v101, %v100
    %v104 = vrot.slane %v83, 4
    %vm105 = vcmask 1044484
    %v106 = vsel %vm105, %v104, %v103
    %v107 = vrot.slane %v84, 3
    %vm108 = vcmask 1045509
    %v109 = vsel %vm108, %v107, %v106
    %v110 = vrot.slane %v85, 2
    %vm111 = vcmask 1046534
    %v112 = vsel %vm111, %v110, %v109
    %v113 = vrot.slane %v86, 1
    %vm114 = vcmask 1047559
    %v115 = vsel %vm114, %v113, %v112
    %v117 = vrot.slane %v79, 1
    %v118 = vsel %vm96, %v80, %v117
    %v119 = vrot.slane %v81, 7
    %v120 = vsel %vm99, %v119, %v118
    %v121 = vrot.slane %v82, 6
    %v122 = vsel %vm102, %v121, %v120
    %v123 = vrot.slane %v83, 5
    %v124 = vsel %vm105, %v123, %v122
    %v125 = vrot.slane %v84, 4
    %v126 = vsel %vm108, %v125, %v124
    %v127 = vrot.slane %v85, 3
    %v128 = vsel %vm111, %v127, %v126
    %v129 = vrot.slane %v86, 2
    %v130 = vsel %vm114, %v129, %v128
    %v132 = vld [vmem:[%s5] sm:$0x7f]
    %v133 = vld [vmem:[#allocation7] sm:$0xff]
    %v134 = vld [vmem:[#allocation7 + $0x8] sm:$0xff]
    %v135 = vld [vmem:[#allocation7 + $0x10] sm:$0xff]
    %v136 = vld [vmem:[#allocation7 + $0x18] sm:$0xff]
    %v137 = vld [vmem:[#allocation7 + $0x20] sm:$0xff]
    %v138 = vld [vmem:[#allocation7 + $0x28] sm:$0xff]
    %v139 = vld [vmem:[#allocation7 + $0x30] sm:$0xff]
    %v140 = vld [vmem:[#allocation7 + $0x38] sm:$0xff]
    %v141 = vld [vmem:[#allocation7 + $0x40] sm:$0xff]
    %v142 = vld [vmem:[#allocation7 + $0x48] sm:$0xff]
    %v143 = vld [vmem:[#allocation7 + $0x50] sm:$0xff]
    %v144 = vld [vmem:[#allocation7 + $0x58] sm:$0xff]
    %v145 = vld [vmem:[#allocation7 + $0x60] sm:$0xff]
    %v146 = vld [vmem:[#allocation7 + $0x68] sm:$0xff]
    %v147 = vld [vmem:[#allocation7 + $0x70] sm:$0xff]
    %v148 = vld [vmem:[#allocation7 + $0x78] sm:$0xff]
    %v149 = vld [vmem:[#allocation7 + $0x80] sm:$0xff]
    %v150 = vld [vmem:[#allocation7 + $0x88] sm:$0xff]
    %v151 = vld [vmem:[#allocation7 + $0x90] sm:$0xff]
    %v152 = vld [vmem:[#allocation7 + $0x98] sm:$0xff]
    %v153 = vld [vmem:[#allocation7 + $0xa0] sm:$0xff]
    %v154 = vld [vmem:[#allocation7 + $0xa8] sm:$0xff]
    %v155 = vld [vmem:[#allocation7 + $0xb0] sm:$0xff]
    %v156 = vld [vmem:[#allocation7 + $0xb8] sm:$0xff]
    %v157 = vld [vmem:[#allocation7 + $0xc0] sm:$0xff]
    %v158 = vld [vmem:[#allocation7 + $0xc8] sm:$0xff]
    %v159 = vld [vmem:[#allocation7 + $0xd0] sm:$0xff]
    %v160 = vld [vmem:[#allocation7 + $0xd8] sm:$0xff]
    %v161 = vld [vmem:[#allocation7 + $0xe0] sm:$0xff]
    %v162 = vld [vmem:[#allocation7 + $0xe8] sm:$0xff]
    %v163 = vld [vmem:[#allocation7 + $0xf0] sm:$0xff]
    %v164 = vld [vmem:[#allocation7 + $0xf8] sm:$0xff]
    %v165 = vld [vmem:[#allocation7 + $0x100] sm:$0xff]
    %v166 = vld [vmem:[#allocation7 + $0x108] sm:$0xff]
    %v167 = vld [vmem:[#allocation7 + $0x110] sm:$0xff]
    %v168 = vld [vmem:[#allocation7 + $0x118] sm:$0xff]
    %v169 = vld [vmem:[#allocation7 + $0x120] sm:$0xff]
    %v170 = vld [vmem:[#allocation7 + $0x128] sm:$0xff]
    %v171 = vld [vmem:[#allocation7 + $0x130] sm:$0xff]
    %v172 = vld [vmem:[#allocation7 + $0x138] sm:$0xff]
    %v173 = vld [vmem:[#allocation7 + $0x140] sm:$0xff]
    %v174 = vld [vmem:[#allocation7 + $0x148] sm:$0xff]
    %v175 = vld [vmem:[#allocation7 + $0x150] sm:$0xff]
    %v176 = vld [vmem:[#allocation7 + $0x158] sm:$0xff]
    %v177 = vld [vmem:[#allocation7 + $0x160] sm:$0xff]
    %v178 = vld [vmem:[#allocation7 + $0x168] sm:$0xff]
    %v179 = vld [vmem:[#allocation7 + $0x170] sm:$0xff]
    %v180 = vld [vmem:[#allocation7 + $0x178] sm:$0xff]
    %v181 = vld [vmem:[%s3] sm:$0x7]
    %v183 = vlaneseq
    %v184 = vshrl.u32 %v183, 7
    %v185 = vsub.s32 0, %v184
    %v186 = vrot.slane %v181, %v185
    %v187 = vlaneseq
    %v188 = vshrl.u32 %v187, 7
    %v189 = vsub.s32 1, %v188
    %v190 = vrot.slane %v181, %v189
    %v191 = vlaneseq
    %v192 = vshrl.u32 %v191, 7
    %v193 = vsub.s32 2, %v192
    %v194 = vrot.slane %v181, %v193
    %198 = vmatprep.subr.mxu0 %v134
    %199 = vmatpush1.msra.mxu0 %v133
    %200 = vmatprep.subr.mxu0 %v137
    %201 = vmatpush1.msra.mxu0 %v136
    %202 = vmatprep.subr.mxu0 %v140
    %203 = vmatpush1.msra.mxu0 %v139
    %204 = vmatprep.subr.mxu0 %v143
    %205 = vmatpush1.msra.mxu0 %v142
    %206 = vmatprep.subr.mxu0 %v146
    %207 = vmatpush1.msra.mxu0 %v145
    %208 = vmatprep.subr.mxu0 %v149
    %209 = vmatpush1.msra.mxu0 %v148
    %210 = vmatprep.subr.mxu0 %v152
    %211 = vmatpush1.msra.mxu0 %v151
    %212 = vmatprep.subr.mxu0 %v155
    %213 = vmatpush1.msra.mxu0 %v154
    %214 = vmatprep.subr.mxu0 %v158
    %215 = vmatpush1.msra.mxu0 %v157
    %216 = vmatprep.subr.mxu0 %v161
    %217 = vmatpush1.msra.mxu0 %v160
    %218 = vmatprep.subr.mxu0 %v164
    %219 = vmatpush1.msra.mxu0 %v163
    %220 = vmatprep.subr.mxu0 %v167
    %221 = vmatpush1.msra.mxu0 %v166
    %222 = vmatprep.subr.mxu0 %v170
    %223 = vmatpush1.msra.mxu0 %v169
    %224 = vmatprep.subr.mxu0 %v173
    %225 = vmatpush1.msra.mxu0 %v172
    %226 = vmatprep.subr.mxu0 %v176
    %227 = vmatpush1.msra.mxu0 %v175
    %228 = vmatprep.subr.mxu0 %v179
    %229 = vmatpush1.msra.mxu0 %v178
    %230 = vmatprep.subr.mxu0 0.0
    %231 = vmatpush1.msra.mxu0 0.0
    %232 = vmatprep.subr.mxu0 0.0
    %233 = vmatpush1.msra.mxu0 0.0
    %234 = vmatprep.subr.mxu0 0.0
    %235 = vmatpush1.msra.mxu0 0.0
    %236 = vmatprep.subr.mxu0 0.0
    %237 = vmatpush1.msra.mxu0 0.0
    %238 = vmatprep.subr.mxu0 0.0
    %239 = vmatpush1.msra.mxu0 0.0
    %240 = vmatprep.subr.mxu0 0.0
    %241 = vmatpush1.msra.mxu0 0.0
    %242 = vmatprep.subr.mxu0 0.0
    %243 = vmatpush1.msra.mxu0 0.0
    %244 = vmatprep.subr.mxu0 0.0
    %245 = vmatpush1.msra.mxu0 0.0
    %246 = vmatprep.subr.mxu0 0.0
    %247 = vmatpush1.msra.mxu0 0.0
    %248 = vmatprep.subr.mxu0 0.0
    %249 = vmatpush1.msra.mxu0 0.0
    %250 = vmatprep.subr.mxu0 0.0
    %251 = vmatpush1.msra.mxu0 0.0
    %252 = vmatprep.subr.mxu0 0.0
    %253 = vmatpush1.msra.mxu0 0.0
    %254 = vmatprep.subr.mxu0 0.0
    %255 = vmatpush1.msra.mxu0 0.0
    %256 = vmatprep.subr.mxu0 0.0
    %257 = vmatpush1.msra.mxu0 0.0
    %258 = vmatprep.subr.mxu0 0.0
    %259 = vmatpush1.msra.mxu0 0.0
    %260 = vmatprep.subr.mxu0 0.0
    %261 = vmatpush1.msra.mxu0 0.0
    %262 = vmatprep.mubr.f32.mxu0 0.0
    %263 = vmatmul.mubr.f32.gmra.mrb[0].mxu0 %v115
    %v264 = vpop.f32.mrb[0].mxu0
    %v265 = vadd.f32 %v186, %v264
    %v266 = vpop.f32.mrb[0].mxu0
    %v267 = vadd.f32 %v190, %v266
    %268 = vmatprep.mubr.f32.mxu0 0.0
    %269 = vmatmul.mubr.f32.gmra.mrb[0].mxu0 %v130
    %v270 = vpop.f32.mrb[0].mxu0
    %v271 = vadd.f32 %v186, %v270
    %v272 = vpop.f32.mrb[0].mxu0
    %v273 = vadd.f32 %v190, %v272
    %274 = vdwg.mxu0
    %275 = vmatprep.subr.mxu0 0.0
    %276 = vmatpush1.msra.mxu0 %v135
    %277 = vmatprep.subr.mxu0 0.0
    %278 = vmatpush1.msra.mxu0 %v138
    %279 = vmatprep.subr.mxu0 0.0
    %280 = vmatpush1.msra.mxu0 %v141
    %281 = vmatprep.subr.mxu0 0.0
    %282 = vmatpush1.msra.mxu0 %v144
    %283 = vmatprep.subr.mxu0 0.0
    %284 = vmatpush1.msra.mxu0 %v147
    %285 = vmatprep.subr.mxu0 0.0
    %286 = vmatpush1.msra.mxu0 %v150
    %287 = vmatprep.subr.mxu0 0.0
    %288 = vmatpush1.msra.mxu0 %v153
    %289 = vmatprep.subr.mxu0 0.0
    %290 = vmatpush1.msra.mxu0 %v156
    %291 = vmatprep.subr.mxu0 0.0
    %292 = vmatpush1.msra.mxu0 %v159
    %293 = vmatprep.subr.mxu0 0.0
    %294 = vmatpush1.msra.mxu0 %v162
    %295 = vmatprep.subr.mxu0 0.0
    %296 = vmatpush1.msra.mxu0 %v165
    %297 = vmatprep.subr.mxu0 0.0
    %298 = vmatpush1.msra.mxu0 %v168
    %299 = vmatprep.subr.mxu0 0.0
    %300 = vmatpush1.msra.mxu0 %v171
    %301 = vmatprep.subr.mxu0 0.0
    %302 = vmatpush1.msra.mxu0 %v174
    %303 = vmatprep.subr.mxu0 0.0
    %304 = vmatpush1.msra.mxu0 %v177
    %305 = vmatprep.subr.mxu0 0.0
    %306 = vmatpush1.msra.mxu0 %v180
    %307 = vmatprep.subr.mxu0 0.0
    %308 = vmatpush1.msra.mxu0 0.0
    %309 = vmatprep.subr.mxu0 0.0
    %310 = vmatpush1.msra.mxu0 0.0
    %311 = vmatprep.subr.mxu0 0.0
    %312 = vmatpush1.msra.mxu0 0.0
    %313 = vmatprep.subr.mxu0 0.0
    %314 = vmatpush1.msra.mxu0 0.0
    %315 = vmatprep.subr.mxu0 0.0
    %316 = vmatpush1.msra.mxu0 0.0
    %317 = vmatprep.subr.mxu0 0.0
    %318 = vmatpush1.msra.mxu0 0.0
    %319 = vmatprep.subr.mxu0 0.0
    %320 = vmatpush1.msra.mxu0 0.0
    %321 = vmatprep.subr.mxu0 0.0
    %322 = vmatpush1.msra.mxu0 0.0
    %323 = vmatprep.subr.mxu0 0.0
    %324 = vmatpush1.msra.mxu0 0.0
    %325 = vmatprep.subr.mxu0 0.0
    %326 = vmatpush1.msra.mxu0 0.0
    %327 = vmatprep.subr.mxu0 0.0
    %328 = vmatpush1.msra.mxu0 0.0
    %329 = vmatprep.subr.mxu0 0.0
    %330 = vmatpush1.msra.mxu0 0.0
    %331 = vmatprep.subr.mxu0 0.0
    %332 = vmatpush1.msra.mxu0 0.0
    %333 = vmatprep.subr.mxu0 0.0
    %334 = vmatpush1.msra.mxu0 0.0
    %335 = vmatprep.subr.mxu0 0.0
    %336 = vmatpush1.msra.mxu0 0.0
    %337 = vmatprep.subr.mxu0 0.0
    %338 = vmatpush1.msra.mxu0 0.0
    %339 = vmatprep.mubr.f32.mxu0 0.0
    %340 = vmatmul.mubr.f32.gmra.mrb[0].mxu0 %v115
    %v341 = vpop.f32.mrb[0].mxu0
    %v342 = vadd.f32 %v194, %v341
    %v343 = vpop.f32.mrb[0].mxu0
    %344 = vmatprep.mubr.f32.mxu0 0.0
    %345 = vmatmul.mubr.f32.gmra.mrb[0].mxu0 %v130
    %v346 = vpop.f32.mrb[0].mxu0
    %v347 = vadd.f32 %v194, %v346
    %v348 = vpop.f32.mrb[0].mxu0
    %349 = vdwg.mxu0
    %351 = vrot.lane.b32.xlu0 %v265, 96
    %v352 = vpop.permute.xlu0 %351
    %353 = vrot.lane.b32.xlu0 %v265, 64
    %v354 = vpop.permute.xlu0 %353
    %355 = vrot.lane.b32.xlu0 %v265, 32
    %v356 = vpop.permute.xlu0 %355
    %358 = vrot.lane.b32.xlu0 %v271, 96
    %v359 = vpop.permute.xlu0 %358
    %360 = vrot.lane.b32.xlu0 %v271, 64
    %v361 = vpop.permute.xlu0 %360
    %362 = vrot.lane.b32.xlu0 %v271, 32
    %v363 = vpop.permute.xlu0 %362
    %365 = vrot.lane.b32.xlu0 %v267, 96
    %v366 = vpop.permute.xlu0 %365
    %367 = vrot.lane.b32.xlu0 %v267, 64
    %v368 = vpop.permute.xlu0 %367
    %369 = vrot.lane.b32.xlu0 %v267, 32
    %v370 = vpop.permute.xlu0 %369
    %372 = vrot.lane.b32.xlu0 %v273, 96
    %v373 = vpop.permute.xlu0 %372
    %374 = vrot.lane.b32.xlu0 %v273, 64
    %v375 = vpop.permute.xlu0 %374
    %376 = vrot.lane.b32.xlu0 %v273, 32
    %v377 = vpop.permute.xlu0 %376
    %379 = vrot.lane.b32.xlu0 %v342, 96
    %v380 = vpop.permute.xlu0 %379
    %382 = vrot.lane.b32.xlu0 %v342, 64
    %v383 = vpop.permute.xlu0 %382
    %385 = vrot.lane.b32.xlu0 %v342, 32
    %v386 = vpop.permute.xlu0 %385
    %389 = vrot.lane.b32.xlu0 %v347, 96
    %v390 = vpop.permute.xlu0 %389
    %392 = vrot.lane.b32.xlu0 %v347, 64
    %v393 = vpop.permute.xlu0 %392
    %395 = vrot.lane.b32.xlu0 %v347, 32
    %v396 = vpop.permute.xlu0 %395
    %v398 = vld [vmem:[#allocation5] sm:$0xff]
    %v399 = vld [vmem:[#allocation5 + $0x8] sm:$0xff]
    %v400 = vld [vmem:[#allocation5 + $0x10] sm:$0xff]
    %v401 = vld [vmem:[#allocation5 + $0x18] sm:$0xff]
    %v402 = vld [vmem:[#allocation5 + $0x20] sm:$0xff]
    %v403 = vld [vmem:[#allocation5 + $0x28] sm:$0xff]
    %v404 = vld [vmem:[#allocation5 + $0x30] sm:$0xff]
    %v405 = vld [vmem:[#allocation5 + $0x38] sm:$0xff]
    %vm406 = vcmask 261120
    %v407 = vsel %vm406, %v265, 0
    %v409 = vsel %vm406, %v267, 0
    %411 = vmatprep.subr.mxu0 0.0
    %412 = vmatpush1.xpose.msra.mxu0 %v409
    %413 = vmatprep.subr.mxu0 0.0
    %414 = vmatpush1.xpose.msra.mxu0 0.0
    %415 = vmatprep.subr.mxu0 0.0
    %416 = vmatpush1.xpose.msra.mxu0 0.0
    %417 = vmatprep.subr.mxu0 0.0
    %418 = vmatpush1.xpose.msra.mxu0 0.0
    %419 = vmatprep.subr.mxu0 0.0
    %420 = vmatpush1.xpose.msra.mxu0 0.0
    %421 = vmatprep.subr.mxu0 0.0
    %422 = vmatpush1.xpose.msra.mxu0 0.0
    %423 = vmatprep.subr.mxu0 0.0
    %424 = vmatpush1.xpose.msra.mxu0 0.0
    %425 = vmatprep.subr.mxu0 0.0
    %426 = vmatpush1.xpose.msra.mxu0 0.0
    %427 = vmatprep.subr.mxu0 0.0
    %428 = vmatpush1.xpose.msra.mxu0 0.0
    %429 = vmatprep.subr.mxu0 0.0
    %430 = vmatpush1.xpose.msra.mxu0 0.0
    %431 = vmatprep.subr.mxu0 0.0
    %432 = vmatpush1.xpose.msra.mxu0 0.0
    %433 = vmatprep.subr.mxu0 0.0
    %434 = vmatpush1.xpose.msra.mxu0 0.0
    %435 = vmatprep.subr.mxu0 0.0
    %436 = vmatpush1.xpose.msra.mxu0 0.0
    %437 = vmatprep.subr.mxu0 0.0
    %438 = vmatpush1.xpose.msra.mxu0 0.0
    %439 = vmatprep.subr.mxu0 0.0
    %440 = vmatpush1.xpose.msra.mxu0 0.0
    %441 = vmatprep.subr.mxu0 0.0
    %442 = vmatpush1.xpose.msra.mxu0 0.0
    %443 = vmatprep.subr.mxu0 0.0
    %444 = vmatpush1.xpose.msra.mxu0 0.0
    %445 = vmatprep.subr.mxu0 0.0
    %446 = vmatpush1.xpose.msra.mxu0 0.0
    %447 = vmatprep.subr.mxu0 0.0
    %448 = vmatpush1.xpose.msra.mxu0 0.0
    %449 = vmatprep.subr.mxu0 0.0
    %450 = vmatpush1.xpose.msra.mxu0 0.0
    %451 = vmatprep.subr.mxu0 0.0
    %452 = vmatpush1.xpose.msra.mxu0 0.0
    %453 = vmatprep.subr.mxu0 0.0
    %454 = vmatpush1.xpose.msra.mxu0 0.0
    %455 = vmatprep.subr.mxu0 0.0
    %456 = vmatpush1.xpose.msra.mxu0 0.0
    %457 = vmatprep.subr.mxu0 0.0
    %458 = vmatpush1.xpose.msra.mxu0 0.0
    %459 = vmatprep.subr.mxu0 0.0
    %460 = vmatpush1.xpose.msra.mxu0 0.0
    %461 = vmatprep.subr.mxu0 0.0
    %462 = vmatpush1.xpose.msra.mxu0 0.0
    %463 = vmatprep.subr.mxu0 0.0
    %464 = vmatpush1.xpose.msra.mxu0 0.0
    %465 = vmatprep.subr.mxu0 0.0
    %466 = vmatpush1.xpose.msra.mxu0 0.0
    %467 = vmatprep.subr.mxu0 0.0
    %468 = vmatpush1.xpose.msra.mxu0 0.0
    %469 = vmatprep.subr.mxu0 0.0
    %470 = vmatpush1.xpose.msra.mxu0 0.0
    %471 = vmatprep.subr.mxu0 0.0
    %472 = vmatpush1.xpose.msra.mxu0 0.0
    %473 = vmatprep.subr.mxu0 0.0
    %474 = vmatpush1.xpose.msra.mxu0 0.0
    %475 = vmatprep.mubr.f32.mxu0 0.0
    %476 = vmatmul.mubr.f32.gmra.mrb[0].mxu0 %v407
    %v477 = vpop.f32.mrb[0].mxu0
    %v478 = vadd.f32 %v398, %v477
    %v479 = vpop.f32.mrb[0].mxu0
    %480 = vdwg.mxu0
    %v481 = vsel %vm406, %v352, 0
    %v483 = vsel %vm406, %v366, 0
    %485 = vmatprep.subr.mxu0 0.0
    %486 = vmatpush1.xpose.msra.mxu0 %v483
    %487 = vmatprep.subr.mxu0 0.0
    %488 = vmatpush1.xpose.msra.mxu0 0.0
    %489 = vmatprep.subr.mxu0 0.0
    %490 = vmatpush1.xpose.msra.mxu0 0.0
    %491 = vmatprep.subr.mxu0 0.0
    %492 = vmatpush1.xpose.msra.mxu0 0.0
    %493 = vmatprep.subr.mxu0 0.0
    %494 = vmatpush1.xpose.msra.mxu0 0.0
    %495 = vmatprep.subr.mxu0 0.0
    %496 = vmatpush1.xpose.msra.mxu0 0.0
    %497 = vmatprep.subr.mxu0 0.0
    %498 = vmatpush1.xpose.msra.mxu0 0.0
    %499 = vmatprep.subr.mxu0 0.0
    %500 = vmatpush1.xpose.msra.mxu0 0.0
    %501 = vmatprep.subr.mxu0 0.0
    %502 = vmatpush1.xpose.msra.mxu0 0.0
    %503 = vmatprep.subr.mxu0 0.0
    %504 = vmatpush1.xpose.msra.mxu0 0.0
    %505 = vmatprep.subr.mxu0 0.0
    %506 = vmatpush1.xpose.msra.mxu0 0.0
    %507 = vmatprep.subr.mxu0 0.0
    %508 = vmatpush1.xpose.msra.mxu0 0.0
    %509 = vmatprep.subr.mxu0 0.0
    %510 = vmatpush1.xpose.msra.mxu0 0.0
    %511 = vmatprep.subr.mxu0 0.0
    %512 = vmatpush1.xpose.msra.mxu0 0.0
    %513 = vmatprep.subr.mxu0 0.0
    %514 = vmatpush1.xpose.msra.mxu0 0.0
    %515 = vmatprep.subr.mxu0 0.0
    %516 = vmatpush1.xpose.msra.mxu0 0.0
    %517 = vmatprep.subr.mxu0 0.0
    %518 = vmatpush1.xpose.msra.mxu0 0.0
    %519 = vmatprep.subr.mxu0 0.0
    %520 = vmatpush1.xpose.msra.mxu0 0.0
    %521 = vmatprep.subr.mxu0 0.0
    %522 = vmatpush1.xpose.msra.mxu0 0.0
    %523 = vmatprep.subr.mxu0 0.0
    %524 = vmatpush1.xpose.msra.mxu0 0.0
    %525 = vmatprep.subr.mxu0 0.0
    %526 = vmatpush1.xpose.msra.mxu0 0.0
    %527 = vmatprep.subr.mxu0 0.0
    %528 = vmatpush1.xpose.msra.mxu0 0.0
    %529 = vmatprep.subr.mxu0 0.0
    %530 = vmatpush1.xpose.msra.mxu0 0.0
    %531 = vmatprep.subr.mxu0 0.0
    %532 = vmatpush1.xpose.msra.mxu0 0.0
    %533 = vmatprep.subr.mxu0 0.0
    %534 = vmatpush1.xpose.msra.mxu0 0.0
    %535 = vmatprep.subr.mxu0 0.0
    %536 = vmatpush1.xpose.msra.mxu0 0.0
    %537 = vmatprep.subr.mxu0 0.0
    %538 = vmatpush1.xpose.msra.mxu0 0.0
    %539 = vmatprep.subr.mxu0 0.0
    %540 = vmatpush1.xpose.msra.mxu0 0.0
    %541 = vmatprep.subr.mxu0 0.0
    %542 = vmatpush1.xpose.msra.mxu0 0.0
    %543 = vmatprep.subr.mxu0 0.0
    %544 = vmatpush1.xpose.msra.mxu0 0.0
    %545 = vmatprep.subr.mxu0 0.0
    %546 = vmatpush1.xpose.msra.mxu0 0.0
    %547 = vmatprep.subr.mxu0 0.0
    %548 = vmatpush1.xpose.msra.mxu0 0.0
    %549 = vmatprep.mubr.f32.mxu0 0.0
    %550 = vmatmul.mubr.f32.gmra.mrb[0].mxu0 %v481
    %v551 = vpop.f32.mrb[0].mxu0
    %v552 = vadd.f32 %v399, %v551
    %v553 = vpop.f32.mrb[0].mxu0
    %554 = vdwg.mxu0
    %v555 = vsel %vm406, %v354, 0
    %v557 = vsel %vm406, %v368, 0
    %559 = vmatprep.subr.mxu0 0.0
    %560 = vmatpush1.xpose.msra.mxu0 %v557
    %561 = vmatprep.subr.mxu0 0.0
    %562 = vmatpush1.xpose.msra.mxu0 0.0
    %563 = vmatprep.subr.mxu0 0.0
    %564 = vmatpush1.xpose.msra.mxu0 0.0
    %565 = vmatprep.subr.mxu0 0.0
    %566 = vmatpush1.xpose.msra.mxu0 0.0
    %567 = vmatprep.subr.mxu0 0.0
    %568 = vmatpush1.xpose.msra.mxu0 0.0
    %569 = vmatprep.subr.mxu0 0.0
    %570 = vmatpush1.xpose.msra.mxu0 0.0
    %571 = vmatprep.subr.mxu0 0.0
    %572 = vmatpush1.xpose.msra.mxu0 0.0
    %573 = vmatprep.subr.mxu0 0.0
    %574 = vmatpush1.xpose.msra.mxu0 0.0
    %575 = vmatprep.subr.mxu0 0.0
    %576 = vmatpush1.xpose.msra.mxu0 0.0
    %577 = vmatprep.subr.mxu0 0.0
    %578 = vmatpush1.xpose.msra.mxu0 0.0
    %579 = vmatprep.subr.mxu0 0.0
    %580 = vmatpush1.xpose.msra.mxu0 0.0
    %581 = vmatprep.subr.mxu0 0.0
    %582 = vmatpush1.xpose.msra.mxu0 0.0
    %583 = vmatprep.subr.mxu0 0.0
    %584 = vmatpush1.xpose.msra.mxu0 0.0
    %585 = vmatprep.subr.mxu0 0.0
    %586 = vmatpush1.xpose.msra.mxu0 0.0
    %587 = vmatprep.subr.mxu0 0.0
    %588 = vmatpush1.xpose.msra.mxu0 0.0
    %589 = vmatprep.subr.mxu0 0.0
    %590 = vmatpush1.xpose.msra.mxu0 0.0
    %591 = vmatprep.subr.mxu0 0.0
    %592 = vmatpush1.xpose.msra.mxu0 0.0
    %593 = vmatprep.subr.mxu0 0.0
    %594 = vmatpush1.xpose.msra.mxu0 0.0
    %595 = vmatprep.subr.mxu0 0.0
    %596 = vmatpush1.xpose.msra.mxu0 0.0
    %597 = vmatprep.subr.mxu0 0.0
    %598 = vmatpush1.xpose.msra.mxu0 0.0
    %599 = vmatprep.subr.mxu0 0.0
    %600 = vmatpush1.xpose.msra.mxu0 0.0
    %601 = vmatprep.subr.mxu0 0.0
    %602 = vmatpush1.xpose.msra.mxu0 0.0
    %603 = vmatprep.subr.mxu0 0.0
    %604 = vmatpush1.xpose.msra.mxu0 0.0
    %605 = vmatprep.subr.mxu0 0.0
    %606 = vmatpush1.xpose.msra.mxu0 0.0
    %607 = vmatprep.subr.mxu0 0.0
    %608 = vmatpush1.xpose.msra.mxu0 0.0
    %609 = vmatprep.subr.mxu0 0.0
    %610 = vmatpush1.xpose.msra.mxu0 0.0
    %611 = vmatprep.subr.mxu0 0.0
    %612 = vmatpush1.xpose.msra.mxu0 0.0
    %613 = vmatprep.subr.mxu0 0.0
    %614 = vmatpush1.xpose.msra.mxu0 0.0
    %615 = vmatprep.subr.mxu0 0.0
    %616 = vmatpush1.xpose.msra.mxu0 0.0
    %617 = vmatprep.subr.mxu0 0.0
    %618 = vmatpush1.xpose.msra.mxu0 0.0
    %619 = vmatprep.subr.mxu0 0.0
    %620 = vmatpush1.xpose.msra.mxu0 0.0
    %621 = vmatprep.subr.mxu0 0.0
    %622 = vmatpush1.xpose.msra.mxu0 0.0
    %623 = vmatprep.mubr.f32.mxu0 0.0
    %624 = vmatmul.mubr.f32.gmra.mrb[0].mxu0 %v555
    %v625 = vpop.f32.mrb[0].mxu0
    %v626 = vadd.f32 %v400, %v625
    %v627 = vpop.f32.mrb[0].mxu0
    %628 = vdwg.mxu0
    %v629 = vsel %vm406, %v356, 0
    %v631 = vsel %vm406, %v370, 0
    %633 = vmatprep.subr.mxu0 0.0
    %634 = vmatpush1.xpose.msra.mxu0 %v631
    %635 = vmatprep.subr.mxu0 0.0
    %636 = vmatpush1.xpose.msra.mxu0 0.0
    %637 = vmatprep.subr.mxu0 0.0
    %638 = vmatpush1.xpose.msra.mxu0 0.0
    %639 = vmatprep.subr.mxu0 0.0
    %640 = vmatpush1.xpose.msra.mxu0 0.0
    %641 = vmatprep.subr.mxu0 0.0
    %642 = vmatpush1.xpose.msra.mxu0 0.0
    %643 = vmatprep.subr.mxu0 0.0
    %644 = vmatpush1.xpose.msra.mxu0 0.0
    %645 = vmatprep.subr.mxu0 0.0
    %646 = vmatpush1.xpose.msra.mxu0 0.0
    %647 = vmatprep.subr.mxu0 0.0
    %648 = vmatpush1.xpose.msra.mxu0 0.0
    %649 = vmatprep.subr.mxu0 0.0
    %650 = vmatpush1.xpose.msra.mxu0 0.0
    %651 = vmatprep.subr.mxu0 0.0
    %652 = vmatpush1.xpose.msra.mxu0 0.0
    %653 = vmatprep.subr.mxu0 0.0
    %654 = vmatpush1.xpose.msra.mxu0 0.0
    %655 = vmatprep.subr.mxu0 0.0
    %656 = vmatpush1.xpose.msra.mxu0 0.0
    %657 = vmatprep.subr.mxu0 0.0
    %658 = vmatpush1.xpose.msra.mxu0 0.0
    %659 = vmatprep.subr.mxu0 0.0
    %660 = vmatpush1.xpose.msra.mxu0 0.0
    %661 = vmatprep.subr.mxu0 0.0
    %662 = vmatpush1.xpose.msra.mxu0 0.0
    %663 = vmatprep.subr.mxu0 0.0
    %664 = vmatpush1.xpose.msra.mxu0 0.0
    %665 = vmatprep.subr.mxu0 0.0
    %666 = vmatpush1.xpose.msra.mxu0 0.0
    %667 = vmatprep.subr.mxu0 0.0
    %668 = vmatpush1.xpose.msra.mxu0 0.0
    %669 = vmatprep.subr.mxu0 0.0
    %670 = vmatpush1.xpose.msra.mxu0 0.0
    %671 = vmatprep.subr.mxu0 0.0
    %672 = vmatpush1.xpose.msra.mxu0 0.0
    %673 = vmatprep.subr.mxu0 0.0
    %674 = vmatpush1.xpose.msra.mxu0 0.0
    %675 = vmatprep.subr.mxu0 0.0
    %676 = vmatpush1.xpose.msra.mxu0 0.0
    %677 = vmatprep.subr.mxu0 0.0
    %678 = vmatpush1.xpose.msra.mxu0 0.0
    %679 = vmatprep.subr.mxu0 0.0
    %680 = vmatpush1.xpose.msra.mxu0 0.0
    %681 = vmatprep.subr.mxu0 0.0
    %682 = vmatpush1.xpose.msra.mxu0 0.0
    %683 = vmatprep.subr.mxu0 0.0
    %684 = vmatpush1.xpose.msra.mxu0 0.0
    %685 = vmatprep.subr.mxu0 0.0
    %686 = vmatpush1.xpose.msra.mxu0 0.0
    %687 = vmatprep.subr.mxu0 0.0
    %688 = vmatpush1.xpose.msra.mxu0 0.0
    %689 = vmatprep.subr.mxu0 0.0
    %690 = vmatpush1.xpose.msra.mxu0 0.0
    %691 = vmatprep.subr.mxu0 0.0
    %692 = vmatpush1.xpose.msra.mxu0 0.0
    %693 = vmatprep.subr.mxu0 0.0
    %694 = vmatpush1.xpose.msra.mxu0 0.0
    %695 = vmatprep.subr.mxu0 0.0
    %696 = vmatpush1.xpose.msra.mxu0 0.0
    %697 = vmatprep.mubr.f32.mxu0 0.0
    %698 = vmatmul.mubr.f32.gmra.mrb[0].mxu0 %v629
    %v699 = vpop.f32.mrb[0].mxu0
    %v700 = vadd.f32 %v401, %v699
    %v701 = vpop.f32.mrb[0].mxu0
    %702 = vdwg.mxu0
    %v703 = vsel %vm406, %v271, 0
    %v705 = vsel %vm406, %v273, 0
    %707 = vmatprep.subr.mxu0 0.0
    %708 = vmatpush1.xpose.msra.mxu0 %v705
    %709 = vmatprep.subr.mxu0 0.0
    %710 = vmatpush1.xpose.msra.mxu0 0.0
    %711 = vmatprep.subr.mxu0 0.0
    %712 = vmatpush1.xpose.msra.mxu0 0.0
    %713 = vmatprep.subr.mxu0 0.0
    %714 = vmatpush1.xpose.msra.mxu0 0.0
    %715 = vmatprep.subr.mxu0 0.0
    %716 = vmatpush1.xpose.msra.mxu0 0.0
    %717 = vmatprep.subr.mxu0 0.0
    %718 = vmatpush1.xpose.msra.mxu0 0.0
    %719 = vmatprep.subr.mxu0 0.0
    %720 = vmatpush1.xpose.msra.mxu0 0.0
    %721 = vmatprep.subr.mxu0 0.0
    %722 = vmatpush1.xpose.msra.mxu0 0.0
    %723 = vmatprep.subr.mxu0 0.0
    %724 = vmatpush1.xpose.msra.mxu0 0.0
    %725 = vmatprep.subr.mxu0 0.0
    %726 = vmatpush1.xpose.msra.mxu0 0.0
    %727 = vmatprep.subr.mxu0 0.0
    %728 = vmatpush1.xpose.msra.mxu0 0.0
    %729 = vmatprep.subr.mxu0 0.0
    %730 = vmatpush1.xpose.msra.mxu0 0.0
    %731 = vmatprep.subr.mxu0 0.0
    %732 = vmatpush1.xpose.msra.mxu0 0.0
    %733 = vmatprep.subr.mxu0 0.0
    %734 = vmatpush1.xpose.msra.mxu0 0.0
    %735 = vmatprep.subr.mxu0 0.0
    %736 = vmatpush1.xpose.msra.mxu0 0.0
    %737 = vmatprep.subr.mxu0 0.0
    %738 = vmatpush1.xpose.msra.mxu0 0.0
    %739 = vmatprep.subr.mxu0 0.0
    %740 = vmatpush1.xpose.msra.mxu0 0.0
    %741 = vmatprep.subr.mxu0 0.0
    %742 = vmatpush1.xpose.msra.mxu0 0.0
    %743 = vmatprep.subr.mxu0 0.0
    %744 = vmatpush1.xpose.msra.mxu0 0.0
    %745 = vmatprep.subr.mxu0 0.0
    %746 = vmatpush1.xpose.msra.mxu0 0.0
    %747 = vmatprep.subr.mxu0 0.0
    %748 = vmatpush1.xpose.msra.mxu0 0.0
    %749 = vmatprep.subr.mxu0 0.0
    %750 = vmatpush1.xpose.msra.mxu0 0.0
    %751 = vmatprep.subr.mxu0 0.0
    %752 = vmatpush1.xpose.msra.mxu0 0.0
    %753 = vmatprep.subr.mxu0 0.0
    %754 = vmatpush1.xpose.msra.mxu0 0.0
    %755 = vmatprep.subr.mxu0 0.0
    %756 = vmatpush1.xpose.msra.mxu0 0.0
    %757 = vmatprep.subr.mxu0 0.0
    %758 = vmatpush1.xpose.msra.mxu0 0.0
    %759 = vmatprep.subr.mxu0 0.0
    %760 = vmatpush1.xpose.msra.mxu0 0.0
    %761 = vmatprep.subr.mxu0 0.0
    %762 = vmatpush1.xpose.msra.mxu0 0.0
    %763 = vmatprep.subr.mxu0 0.0
    %764 = vmatpush1.xpose.msra.mxu0 0.0
    %765 = vmatprep.subr.mxu0 0.0
    %766 = vmatpush1.xpose.msra.mxu0 0.0
    %767 = vmatprep.subr.mxu0 0.0
    %768 = vmatpush1.xpose.msra.mxu0 0.0
    %769 = vmatprep.subr.mxu0 0.0
    %770 = vmatpush1.xpose.msra.mxu0 0.0
    %771 = vmatprep.mubr.f32.mxu0 0.0
    %772 = vmatmul.mubr.f32.gmra.mrb[0].mxu0 %v703
    %v773 = vpop.f32.mrb[0].mxu0
    %v774 = vadd.f32 %v402, %v773
    %v775 = vpop.f32.mrb[0].mxu0
    %776 = vdwg.mxu0
    %v777 = vsel %vm406, %v359, 0
    %v779 = vsel %vm406, %v373, 0
    %781 = vmatprep.subr.mxu0 0.0
    %782 = vmatpush1.xpose.msra.mxu0 %v779
    %783 = vmatprep.subr.mxu0 0.0
    %784 = vmatpush1.xpose.msra.mxu0 0.0
    %785 = vmatprep.subr.mxu0 0.0
    %786 = vmatpush1.xpose.msra.mxu0 0.0
    %787 = vmatprep.subr.mxu0 0.0
    %788 = vmatpush1.xpose.msra.mxu0 0.0
    %789 = vmatprep.subr.mxu0 0.0
    %790 = vmatpush1.xpose.msra.mxu0 0.0
    %791 = vmatprep.subr.mxu0 0.0
    %792 = vmatpush1.xpose.msra.mxu0 0.0
    %793 = vmatprep.subr.mxu0 0.0
    %794 = vmatpush1.xpose.msra.mxu0 0.0
    %795 = vmatprep.subr.mxu0 0.0
    %796 = vmatpush1.xpose.msra.mxu0 0.0
    %797 = vmatprep.subr.mxu0 0.0
    %798 = vmatpush1.xpose.msra.mxu0 0.0
    %799 = vmatprep.subr.mxu0 0.0
    %800 = vmatpush1.xpose.msra.mxu0 0.0
    %801 = vmatprep.subr.mxu0 0.0
    %802 = vmatpush1.xpose.msra.mxu0 0.0
    %803 = vmatprep.subr.mxu0 0.0
    %804 = vmatpush1.xpose.msra.mxu0 0.0
    %805 = vmatprep.subr.mxu0 0.0
    %806 = vmatpush1.xpose.msra.mxu0 0.0
    %807 = vmatprep.subr.mxu0 0.0
    %808 = vmatpush1.xpose.msra.mxu0 0.0
    %809 = vmatprep.subr.mxu0 0.0
    %810 = vmatpush1.xpose.msra.mxu0 0.0
    %811 = vmatprep.subr.mxu0 0.0
    %812 = vmatpush1.xpose.msra.mxu0 0.0
    %813 = vmatprep.subr.mxu0 0.0
    %814 = vmatpush1.xpose.msra.mxu0 0.0
    %815 = vmatprep.subr.mxu0 0.0
    %816 = vmatpush1.xpose.msra.mxu0 0.0
    %817 = vmatprep.subr.mxu0 0.0
    %818 = vmatpush1.xpose.msra.mxu0 0.0
    %819 = vmatprep.subr.mxu0 0.0
    %820 = vmatpush1.xpose.msra.mxu0 0.0
    %821 = vmatprep.subr.mxu0 0.0
    %822 = vmatpush1.xpose.msra.mxu0 0.0
    %823 = vmatprep.subr.mxu0 0.0
    %824 = vmatpush1.xpose.msra.mxu0 0.0
    %825 = vmatprep.subr.mxu0 0.0
    %826 = vmatpush1.xpose.msra.mxu0 0.0
    %827 = vmatprep.subr.mxu0 0.0
    %828 = vmatpush1.xpose.msra.mxu0 0.0
    %829 = vmatprep.subr.mxu0 0.0
    %830 = vmatpush1.xpose.msra.mxu0 0.0
    %831 = vmatprep.subr.mxu0 0.0
    %832 = vmatpush1.xpose.msra.mxu0 0.0
    %833 = vmatprep.subr.mxu0 0.0
    %834 = vmatpush1.xpose.msra.mxu0 0.0
    %835 = vmatprep.subr.mxu0 0.0
    %836 = vmatpush1.xpose.msra.mxu0 0.0
    %837 = vmatprep.subr.mxu0 0.0
    %838 = vmatpush1.xpose.msra.mxu0 0.0
    %839 = vmatprep.subr.mxu0 0.0
    %840 = vmatpush1.xpose.msra.mxu0 0.0
    %841 = vmatprep.subr.mxu0 0.0
    %842 = vmatpush1.xpose.msra.mxu0 0.0
    %843 = vmatprep.subr.mxu0 0.0
    %844 = vmatpush1.xpose.msra.mxu0 0.0
    %845 = vmatprep.mubr.f32.mxu0 0.0
    %846 = vmatmul.mubr.f32.gmra.mrb[0].mxu0 %v777
    %v847 = vpop.f32.mrb[0].mxu0
    %v848 = vadd.f32 %v403, %v847
    %v849 = vpop.f32.mrb[0].mxu0
    %850 = vdwg.mxu0
    %v851 = vsel %vm406, %v361, 0
    %v853 = vsel %vm406, %v375, 0
    %855 = vmatprep.subr.mxu0 0.0
    %856 = vmatpush1.xpose.msra.mxu0 %v853
    %857 = vmatprep.subr.mxu0 0.0
    %858 = vmatpush1.xpose.msra.mxu0 0.0
    %859 = vmatprep.subr.mxu0 0.0
    %860 = vmatpush1.xpose.msra.mxu0 0.0
    %861 = vmatprep.subr.mxu0 0.0
    %862 = vmatpush1.xpose.msra.mxu0 0.0
    %863 = vmatprep.subr.mxu0 0.0
    %864 = vmatpush1.xpose.msra.mxu0 0.0
    %865 = vmatprep.subr.mxu0 0.0
    %866 = vmatpush1.xpose.msra.mxu0 0.0
    %867 = vmatprep.subr.mxu0 0.0
    %868 = vmatpush1.xpose.msra.mxu0 0.0
    %869 = vmatprep.subr.mxu0 0.0
    %870 = vmatpush1.xpose.msra.mxu0 0.0
    %871 = vmatprep.subr.mxu0 0.0
    %872 = vmatpush1.xpose.msra.mxu0 0.0
    %873 = vmatprep.subr.mxu0 0.0
    %874 = vmatpush1.xpose.msra.mxu0 0.0
    %875 = vmatprep.subr.mxu0 0.0
    %876 = vmatpush1.xpose.msra.mxu0 0.0
    %877 = vmatprep.subr.mxu0 0.0
    %878 = vmatpush1.xpose.msra.mxu0 0.0
    %879 = vmatprep.subr.mxu0 0.0
    %880 = vmatpush1.xpose.msra.mxu0 0.0
    %881 = vmatprep.subr.mxu0 0.0
    %882 = vmatpush1.xpose.msra.mxu0 0.0
    %883 = vmatprep.subr.mxu0 0.0
    %884 = vmatpush1.xpose.msra.mxu0 0.0
    %885 = vmatprep.subr.mxu0 0.0
    %886 = vmatpush1.xpose.msra.mxu0 0.0
    %887 = vmatprep.subr.mxu0 0.0
    %888 = vmatpush1.xpose.msra.mxu0 0.0
    %889 = vmatprep.subr.mxu0 0.0
    %890 = vmatpush1.xpose.msra.mxu0 0.0
    %891 = vmatprep.subr.mxu0 0.0
    %892 = vmatpush1.xpose.msra.mxu0 0.0
    %893 = vmatprep.subr.mxu0 0.0
    %894 = vmatpush1.xpose.msra.mxu0 0.0
    %895 = vmatprep.subr.mxu0 0.0
    %896 = vmatpush1.xpose.msra.mxu0 0.0
    %897 = vmatprep.subr.mxu0 0.0
    %898 = vmatpush1.xpose.msra.mxu0 0.0
    %899 = vmatprep.subr.mxu0 0.0
    %900 = vmatpush1.xpose.msra.mxu0 0.0
    %901 = vmatprep.subr.mxu0 0.0
    %902 = vmatpush1.xpose.msra.mxu0 0.0
    %903 = vmatprep.subr.mxu0 0.0
    %904 = vmatpush1.xpose.msra.mxu0 0.0
    %905 = vmatprep.subr.mxu0 0.0
    %906 = vmatpush1.xpose.msra.mxu0 0.0
    %907 = vmatprep.subr.mxu0 0.0
    %908 = vmatpush1.xpose.msra.mxu0 0.0
    %909 = vmatprep.subr.mxu0 0.0
    %910 = vmatpush1.xpose.msra.mxu0 0.0
    %911 = vmatprep.subr.mxu0 0.0
    %912 = vmatpush1.xpose.msra.mxu0 0.0
    %913 = vmatprep.subr.mxu0 0.0
    %914 = vmatpush1.xpose.msra.mxu0 0.0
    %915 = vmatprep.subr.mxu0 0.0
    %916 = vmatpush1.xpose.msra.mxu0 0.0
    %917 = vmatprep.subr.mxu0 0.0
    %918 = vmatpush1.xpose.msra.mxu0 0.0
    %919 = vmatprep.mubr.f32.mxu0 0.0
    %920 = vmatmul.mubr.f32.gmra.mrb[0].mxu0 %v851
    %v921 = vpop.f32.mrb[0].mxu0
    %v922 = vadd.f32 %v404, %v921
    %v923 = vpop.f32.mrb[0].mxu0
    %924 = vdwg.mxu0
    %v925 = vsel %vm406, %v363, 0
    %v927 = vsel %vm406, %v377, 0
    %929 = vmatprep.subr.mxu0 0.0
    %930 = vmatpush1.xpose.msra.mxu0 %v927
    %931 = vmatprep.subr.mxu0 0.0
    %932 = vmatpush1.xpose.msra.mxu0 0.0
    %933 = vmatprep.subr.mxu0 0.0
    %934 = vmatpush1.xpose.msra.mxu0 0.0
    %935 = vmatprep.subr.mxu0 0.0
    %936 = vmatpush1.xpose.msra.mxu0 0.0
    %937 = vmatprep.subr.mxu0 0.0
    %938 = vmatpush1.xpose.msra.mxu0 0.0
    %939 = vmatprep.subr.mxu0 0.0
    %940 = vmatpush1.xpose.msra.mxu0 0.0
    %941 = vmatprep.subr.mxu0 0.0
    %942 = vmatpush1.xpose.msra.mxu0 0.0
    %943 = vmatprep.subr.mxu0 0.0
    %944 = vmatpush1.xpose.msra.mxu0 0.0
    %945 = vmatprep.subr.mxu0 0.0
    %946 = vmatpush1.xpose.msra.mxu0 0.0
    %947 = vmatprep.subr.mxu0 0.0
    %948 = vmatpush1.xpose.msra.mxu0 0.0
    %949 = vmatprep.subr.mxu0 0.0
    %950 = vmatpush1.xpose.msra.mxu0 0.0
    %951 = vmatprep.subr.mxu0 0.0
    %952 = vmatpush1.xpose.msra.mxu0 0.0
    %953 = vmatprep.subr.mxu0 0.0
    %954 = vmatpush1.xpose.msra.mxu0 0.0
    %955 = vmatprep.subr.mxu0 0.0
    %956 = vmatpush1.xpose.msra.mxu0 0.0
    %957 = vmatprep.subr.mxu0 0.0
    %958 = vmatpush1.xpose.msra.mxu0 0.0
    %959 = vmatprep.subr.mxu0 0.0
    %960 = vmatpush1.xpose.msra.mxu0 0.0
    %961 = vmatprep.subr.mxu0 0.0
    %962 = vmatpush1.xpose.msra.mxu0 0.0
    %963 = vmatprep.subr.mxu0 0.0
    %964 = vmatpush1.xpose.msra.mxu0 0.0
    %965 = vmatprep.subr.mxu0 0.0
    %966 = vmatpush1.xpose.msra.mxu0 0.0
    %967 = vmatprep.subr.mxu0 0.0
    %968 = vmatpush1.xpose.msra.mxu0 0.0
    %969 = vmatprep.subr.mxu0 0.0
    %970 = vmatpush1.xpose.msra.mxu0 0.0
    %971 = vmatprep.subr.mxu0 0.0
    %972 = vmatpush1.xpose.msra.mxu0 0.0
    %973 = vmatprep.subr.mxu0 0.0
    %974 = vmatpush1.xpose.msra.mxu0 0.0
    %975 = vmatprep.subr.mxu0 0.0
    %976 = vmatpush1.xpose.msra.mxu0 0.0
    %977 = vmatprep.subr.mxu0 0.0
    %978 = vmatpush1.xpose.msra.mxu0 0.0
    %979 = vmatprep.subr.mxu0 0.0
    %980 = vmatpush1.xpose.msra.mxu0 0.0
    %981 = vmatprep.subr.mxu0 0.0
    %982 = vmatpush1.xpose.msra.mxu0 0.0
    %983 = vmatprep.subr.mxu0 0.0
    %984 = vmatpush1.xpose.msra.mxu0 0.0
    %985 = vmatprep.subr.mxu0 0.0
    %986 = vmatpush1.xpose.msra.mxu0 0.0
    %987 = vmatprep.subr.mxu0 0.0
    %988 = vmatpush1.xpose.msra.mxu0 0.0
    %989 = vmatprep.subr.mxu0 0.0
    %990 = vmatpush1.xpose.msra.mxu0 0.0
    %991 = vmatprep.subr.mxu0 0.0
    %992 = vmatpush1.xpose.msra.mxu0 0.0
    %993 = vmatprep.mubr.f32.mxu0 0.0
    %994 = vmatmul.mubr.f32.gmra.mrb[0].mxu0 %v925
    %v995 = vpop.f32.mrb[0].mxu0
    %v996 = vadd.f32 %v405, %v995
    %v997 = vpop.f32.mrb[0].mxu0
    %998 = vdwg.mxu0
    %vm999 = vcmask 64512
    %v1000 = vsel %vm999, %v478, -inf
    %1001 = vmax.xlane.f32.xlu0 %v1000
    %v1002 = vpop.xlane.xlu0 %1001
    %v1003 = vsel %vm999, %v552, -inf
    %1004 = vmax.xlane.f32.xlu0 %v1003
    %v1005 = vpop.xlane.xlu0 %1004
    %v1006 = vsel %vm999, %v626, -inf
    %1007 = vmax.xlane.f32.xlu0 %v1006
    %v1008 = vpop.xlane.xlu0 %1007
    %v1009 = vsel %vm999, %v700, -inf
    %1010 = vmax.xlane.f32.xlu0 %v1009
    %v1011 = vpop.xlane.xlu0 %1010
    %v1012 = vsel %vm999, %v774, -inf
    %1013 = vmax.xlane.f32.xlu0 %v1012
    %v1014 = vpop.xlane.xlu0 %1013
    %v1015 = vsel %vm999, %v848, -inf
    %1016 = vmax.xlane.f32.xlu0 %v1015
    %v1017 = vpop.xlane.xlu0 %1016
    %v1018 = vsel %vm999, %v922, -inf
    %1019 = vmax.xlane.f32.xlu0 %v1018
    %v1020 = vpop.xlane.xlu0 %1019
    %v1021 = vsel %vm999, %v996, -inf
    %1022 = vmax.xlane.f32.xlu0 %v1021
    %v1023 = vpop.xlane.xlu0 %1022
    %v1024 = vsub.f32 %v478, %v1002
    %v1025 = vsub.f32 %v552, %v1005
    %v1026 = vsub.f32 %v626, %v1008
    %v1027 = vsub.f32 %v700, %v1011
    %v1028 = vsub.f32 %v774, %v1014
    %v1029 = vsub.f32 %v848, %v1017
    %v1030 = vsub.f32 %v922, %v1020
    %v1031 = vsub.f32 %v996, %v1023
    %v1032 = vmul.f32 %v1024, 1.442695
    %v1033 = vpow.pop %v1032
    %v1034 = vmul.f32 %v1025, 1.442695
    %v1035 = vpow.pop %v1034
    %v1036 = vmul.f32 %v1026, 1.442695
    %v1037 = vpow.pop %v1036
    %v1038 = vmul.f32 %v1027, 1.442695
    %v1039 = vpow.pop %v1038
    %v1040 = vmul.f32 %v1028, 1.442695
    %v1041 = vpow.pop %v1040
    %v1042 = vmul.f32 %v1029, 1.442695
    %v1043 = vpow.pop %v1042
    %v1044 = vmul.f32 %v1030, 1.442695
    %v1045 = vpow.pop %v1044
    %v1046 = vmul.f32 %v1031, 1.442695
    %v1047 = vpow.pop %v1046
    %v1048 = vsel %vm999, %v1033, 0.0
    %1049 = vadd.xlane.f32.xlu0 %v1048
    %v1050 = vpop.xlane.xlu0 %1049
    %v1051 = vsel %vm999, %v1035, 0.0
    %1052 = vadd.xlane.f32.xlu0 %v1051
    %v1053 = vpop.xlane.xlu0 %1052
    %v1054 = vsel %vm999, %v1037, 0.0
    %1055 = vadd.xlane.f32.xlu0 %v1054
    %v1056 = vpop.xlane.xlu0 %1055
    %v1057 = vsel %vm999, %v1039, 0.0
    %1058 = vadd.xlane.f32.xlu0 %v1057
    %v1059 = vpop.xlane.xlu0 %1058
    %v1060 = vsel %vm999, %v1041, 0.0
    %1061 = vadd.xlane.f32.xlu0 %v1060
    %v1062 = vpop.xlane.xlu0 %1061
    %v1063 = vsel %vm999, %v1043, 0.0
    %1064 = vadd.xlane.f32.xlu0 %v1063
    %v1065 = vpop.xlane.xlu0 %1064
    %v1066 = vsel %vm999, %v1045, 0.0
    %1067 = vadd.xlane.f32.xlu0 %v1066
    %v1068 = vpop.xlane.xlu0 %1067
    %v1069 = vsel %vm999, %v1047, 0.0
    %1070 = vadd.xlane.f32.xlu0 %v1069
    %v1071 = vpop.xlane.xlu0 %1070
    %v1072 = vrcp.pop %v1050
    %v1073 = vrcp.pop %v1053
    %v1074 = vrcp.pop %v1056
    %v1075 = vrcp.pop %v1059
    %v1076 = vrcp.pop %v1062
    %v1077 = vrcp.pop %v1065
    %v1078 = vrcp.pop %v1068
    %v1079 = vrcp.pop %v1071
    %v1080 = vmul.f32 %v1033, %v1072
    %v1081 = vmul.f32 %v1035, %v1073
    %v1082 = vmul.f32 %v1037, %v1074
    %v1083 = vmul.f32 %v1039, %v1075
    %v1084 = vmul.f32 %v1041, %v1076
    %v1085 = vmul.f32 %v1043, %v1077
    %v1086 = vmul.f32 %v1045, %v1078
    %v1087 = vmul.f32 %v1047, %v1079
    %v1089 = vsel %vm999, %v1080, 0
    %1091 = vmatprep.subr.mxu0 0.0
    %1092 = vmatpush1.msra.mxu0 %v342
    %1093 = vmatprep.subr.mxu0 0.0
    %1094 = vmatpush1.msra.mxu0 0.0
    %1095 = vmatprep.subr.mxu0 0.0
    %1096 = vmatpush1.msra.mxu0 0.0
    %1097 = vmatprep.subr.mxu0 0.0
    %1098 = vmatpush1.msra.mxu0 0.0
    %1099 = vmatprep.subr.mxu0 0.0
    %1100 = vmatpush1.msra.mxu0 0.0
    %1101 = vmatprep.subr.mxu0 0.0
    %1102 = vmatpush1.msra.mxu0 0.0
    %1103 = vmatprep.subr.mxu0 0.0
    %1104 = vmatpush1.msra.mxu0 0.0
    %1105 = vmatprep.subr.mxu0 0.0
    %1106 = vmatpush1.msra.mxu0 0.0
    %1107 = vmatprep.subr.mxu0 0.0
    %1108 = vmatpush1.msra.mxu0 0.0
    %1109 = vmatprep.subr.mxu0 0.0
    %1110 = vmatpush1.msra.mxu0 0.0
    %1111 = vmatprep.subr.mxu0 0.0
    %1112 = vmatpush1.msra.mxu0 0.0
    %1113 = vmatprep.subr.mxu0 0.0
    %1114 = vmatpush1.msra.mxu0 0.0
    %1115 = vmatprep.subr.mxu0 0.0
    %1116 = vmatpush1.msra.mxu0 0.0
    %1117 = vmatprep.subr.mxu0 0.0
    %1118 = vmatpush1.msra.mxu0 0.0
    %1119 = vmatprep.subr.mxu0 0.0
    %1120 = vmatpush1.msra.mxu0 0.0
    %1121 = vmatprep.subr.mxu0 0.0
    %1122 = vmatpush1.msra.mxu0 0.0
    %1123 = vmatprep.subr.mxu0 0.0
    %1124 = vmatpush1.msra.mxu0 0.0
    %1125 = vmatprep.subr.mxu0 0.0
    %1126 = vmatpush1.msra.mxu0 0.0
    %1127 = vmatprep.subr.mxu0 0.0
    %1128 = vmatpush1.msra.mxu0 0.0
    %1129 = vmatprep.subr.mxu0 0.0
    %1130 = vmatpush1.msra.mxu0 0.0
    %1131 = vmatprep.subr.mxu0 0.0
    %1132 = vmatpush1.msra.mxu0 0.0
    %1133 = vmatprep.subr.mxu0 0.0
    %1134 = vmatpush1.msra.mxu0 0.0
    %1135 = vmatprep.subr.mxu0 0.0
    %1136 = vmatpush1.msra.mxu0 0.0
    %1137 = vmatprep.subr.mxu0 0.0
    %1138 = vmatpush1.msra.mxu0 0.0
    %1139 = vmatprep.subr.mxu0 0.0
    %1140 = vmatpush1.msra.mxu0 0.0
    %1141 = vmatprep.subr.mxu0 0.0
    %1142 = vmatpush1.msra.mxu0 0.0
    %1143 = vmatprep.subr.mxu0 0.0
    %1144 = vmatpush1.msra.mxu0 0.0
    %1145 = vmatprep.subr.mxu0 0.0
    %1146 = vmatpush1.msra.mxu0 0.0
    %1147 = vmatprep.subr.mxu0 0.0
    %1148 = vmatpush1.msra.mxu0 0.0
    %1149 = vmatprep.subr.mxu0 0.0
    %1150 = vmatpush1.msra.mxu0 0.0
    %1151 = vmatprep.subr.mxu0 0.0
    %1152 = vmatpush1.msra.mxu0 0.0
    %1153 = vmatprep.subr.mxu0 0.0
    %1154 = vmatpush1.msra.mxu0 0.0
    %1155 = vmatprep.mubr.f32.mxu0 0.0
    %1156 = vmatmul.mubr.f32.gmra.mrb[0].mxu0 %v1089
    %v1157 = vpop.f32.mrb[0].mxu0
    %v1158 = vadd.f32 0.0, %v1157
    %v1159 = vpop.f32.mrb[0].mxu0
    %1160 = vdwg.mxu0
    %v1162 = vsel %vm999, %v1081, 0
    %1164 = vmatprep.subr.mxu0 0.0
    %1165 = vmatpush1.msra.mxu0 %v380
    %1166 = vmatprep.subr.mxu0 0.0
    %1167 = vmatpush1.msra.mxu0 0.0
    %1168 = vmatprep.subr.mxu0 0.0
    %1169 = vmatpush1.msra.mxu0 0.0
    %1170 = vmatprep.subr.mxu0 0.0
    %1171 = vmatpush1.msra.mxu0 0.0
    %1172 = vmatprep.subr.mxu0 0.0
    %1173 = vmatpush1.msra.mxu0 0.0
    %1174 = vmatprep.subr.mxu0 0.0
    %1175 = vmatpush1.msra.mxu0 0.0
    %1176 = vmatprep.subr.mxu0 0.0
    %1177 = vmatpush1.msra.mxu0 0.0
    %1178 = vmatprep.subr.mxu0 0.0
    %1179 = vmatpush1.msra.mxu0 0.0
    %1180 = vmatprep.subr.mxu0 0.0
    %1181 = vmatpush1.msra.mxu0 0.0
    %1182 = vmatprep.subr.mxu0 0.0
    %1183 = vmatpush1.msra.mxu0 0.0
    %1184 = vmatprep.subr.mxu0 0.0
    %1185 = vmatpush1.msra.mxu0 0.0
    %1186 = vmatprep.subr.mxu0 0.0
    %1187 = vmatpush1.msra.mxu0 0.0
    %1188 = vmatprep.subr.mxu0 0.0
    %1189 = vmatpush1.msra.mxu0 0.0
    %1190 = vmatprep.subr.mxu0 0.0
    %1191 = vmatpush1.msra.mxu0 0.0
    %1192 = vmatprep.subr.mxu0 0.0
    %1193 = vmatpush1.msra.mxu0 0.0
    %1194 = vmatprep.subr.mxu0 0.0
    %1195 = vmatpush1.msra.mxu0 0.0
    %1196 = vmatprep.subr.mxu0 0.0
    %1197 = vmatpush1.msra.mxu0 0.0
    %1198 = vmatprep.subr.mxu0 0.0
    %1199 = vmatpush1.msra.mxu0 0.0
    %1200 = vmatprep.subr.mxu0 0.0
    %1201 = vmatpush1.msra.mxu0 0.0
    %1202 = vmatprep.subr.mxu0 0.0
    %1203 = vmatpush1.msra.mxu0 0.0
    %1204 = vmatprep.subr.mxu0 0.0
    %1205 = vmatpush1.msra.mxu0 0.0
    %1206 = vmatprep.subr.mxu0 0.0
    %1207 = vmatpush1.msra.mxu0 0.0
    %1208 = vmatprep.subr.mxu0 0.0
    %1209 = vmatpush1.msra.mxu0 0.0
    %1210 = vmatprep.subr.mxu0 0.0
    %1211 = vmatpush1.msra.mxu0 0.0
    %1212 = vmatprep.subr.mxu0 0.0
    %1213 = vmatpush1.msra.mxu0 0.0
    %1214 = vmatprep.subr.mxu0 0.0
    %1215 = vmatpush1.msra.mxu0 0.0
    %1216 = vmatprep.subr.mxu0 0.0
    %1217 = vmatpush1.msra.mxu0 0.0
    %1218 = vmatprep.subr.mxu0 0.0
    %1219 = vmatpush1.msra.mxu0 0.0
    %1220 = vmatprep.subr.mxu0 0.0
    %1221 = vmatpush1.msra.mxu0 0.0
    %1222 = vmatprep.subr.mxu0 0.0
    %1223 = vmatpush1.msra.mxu0 0.0
    %1224 = vmatprep.subr.mxu0 0.0
    %1225 = vmatpush1.msra.mxu0 0.0
    %1226 = vmatprep.subr.mxu0 0.0
    %1227 = vmatpush1.msra.mxu0 0.0
    %1228 = vmatprep.mubr.f32.mxu0 0.0
    %1229 = vmatmul.mubr.f32.gmra.mrb[0].mxu0 %v1162
    %v1230 = vpop.f32.mrb[0].mxu0
    %v1231 = vadd.f32 0.0, %v1230
    %v1232 = vpop.f32.mrb[0].mxu0
    %1233 = vdwg.mxu0
    %v1235 = vsel %vm999, %v1082, 0
    %1237 = vmatprep.subr.mxu0 0.0
    %1238 = vmatpush1.msra.mxu0 %v383
    %1239 = vmatprep.subr.mxu0 0.0
    %1240 = vmatpush1.msra.mxu0 0.0
    %1241 = vmatprep.subr.mxu0 0.0
    %1242 = vmatpush1.msra.mxu0 0.0
    %1243 = vmatprep.subr.mxu0 0.0
    %1244 = vmatpush1.msra.mxu0 0.0
    %1245 = vmatprep.subr.mxu0 0.0
    %1246 = vmatpush1.msra.mxu0 0.0
    %1247 = vmatprep.subr.mxu0 0.0
    %1248 = vmatpush1.msra.mxu0 0.0
    %1249 = vmatprep.subr.mxu0 0.0
    %1250 = vmatpush1.msra.mxu0 0.0
    %1251 = vmatprep.subr.mxu0 0.0
    %1252 = vmatpush1.msra.mxu0 0.0
    %1253 = vmatprep.subr.mxu0 0.0
    %1254 = vmatpush1.msra.mxu0 0.0
    %1255 = vmatprep.subr.mxu0 0.0
    %1256 = vmatpush1.msra.mxu0 0.0
    %1257 = vmatprep.subr.mxu0 0.0
    %1258 = vmatpush1.msra.mxu0 0.0
    %1259 = vmatprep.subr.mxu0 0.0
    %1260 = vmatpush1.msra.mxu0 0.0
    %1261 = vmatprep.subr.mxu0 0.0
    %1262 = vmatpush1.msra.mxu0 0.0
    %1263 = vmatprep.subr.mxu0 0.0
    %1264 = vmatpush1.msra.mxu0 0.0
    %1265 = vmatprep.subr.mxu0 0.0
    %1266 = vmatpush1.msra.mxu0 0.0
    %1267 = vmatprep.subr.mxu0 0.0
    %1268 = vmatpush1.msra.mxu0 0.0
    %1269 = vmatprep.subr.mxu0 0.0
    %1270 = vmatpush1.msra.mxu0 0.0
    %1271 = vmatprep.subr.mxu0 0.0
    %1272 = vmatpush1.msra.mxu0 0.0
    %1273 = vmatprep.subr.mxu0 0.0
    %1274 = vmatpush1.msra.mxu0 0.0
    %1275 = vmatprep.subr.mxu0 0.0
    %1276 = vmatpush1.msra.mxu0 0.0
    %1277 = vmatprep.subr.mxu0 0.0
    %1278 = vmatpush1.msra.mxu0 0.0
    %1279 = vmatprep.subr.mxu0 0.0
    %1280 = vmatpush1.msra.mxu0 0.0
    %1281 = vmatprep.subr.mxu0 0.0
    %1282 = vmatpush1.msra.mxu0 0.0
    %1283 = vmatprep.subr.mxu0 0.0
    %1284 = vmatpush1.msra.mxu0 0.0
    %1285 = vmatprep.subr.mxu0 0.0
    %1286 = vmatpush1.msra.mxu0 0.0
    %1287 = vmatprep.subr.mxu0 0.0
    %1288 = vmatpush1.msra.mxu0 0.0
    %1289 = vmatprep.subr.mxu0 0.0
    %1290 = vmatpush1.msra.mxu0 0.0
    %1291 = vmatprep.subr.mxu0 0.0
    %1292 = vmatpush1.msra.mxu0 0.0
    %1293 = vmatprep.subr.mxu0 0.0
    %1294 = vmatpush1.msra.mxu0 0.0
    %1295 = vmatprep.subr.mxu0 0.0
    %1296 = vmatpush1.msra.mxu0 0.0
    %1297 = vmatprep.subr.mxu0 0.0
    %1298 = vmatpush1.msra.mxu0 0.0
    %1299 = vmatprep.subr.mxu0 0.0
    %1300 = vmatpush1.msra.mxu0 0.0
    %1301 = vmatprep.mubr.f32.mxu0 0.0
    %1302 = vmatmul.mubr.f32.gmra.mrb[0].mxu0 %v1235
    %v1303 = vpop.f32.mrb[0].mxu0
    %v1304 = vadd.f32 0.0, %v1303
    %v1305 = vpop.f32.mrb[0].mxu0
    %1306 = vdwg.mxu0
    %v1308 = vsel %vm999, %v1083, 0
    %1310 = vmatprep.subr.mxu0 0.0
    %1311 = vmatpush1.msra.mxu0 %v386
    %1312 = vmatprep.subr.mxu0 0.0
    %1313 = vmatpush1.msra.mxu0 0.0
    %1314 = vmatprep.subr.mxu0 0.0
    %1315 = vmatpush1.msra.mxu0 0.0
    %1316 = vmatprep.subr.mxu0 0.0
    %1317 = vmatpush1.msra.mxu0 0.0
    %1318 = vmatprep.subr.mxu0 0.0
    %1319 = vmatpush1.msra.mxu0 0.0
    %1320 = vmatprep.subr.mxu0 0.0
    %1321 = vmatpush1.msra.mxu0 0.0
    %1322 = vmatprep.subr.mxu0 0.0
    %1323 = vmatpush1.msra.mxu0 0.0
    %1324 = vmatprep.subr.mxu0 0.0
    %1325 = vmatpush1.msra.mxu0 0.0
    %1326 = vmatprep.subr.mxu0 0.0
    %1327 = vmatpush1.msra.mxu0 0.0
    %1328 = vmatprep.subr.mxu0 0.0
    %1329 = vmatpush1.msra.mxu0 0.0
    %1330 = vmatprep.subr.mxu0 0.0
    %1331 = vmatpush1.msra.mxu0 0.0
    %1332 = vmatprep.subr.mxu0 0.0
    %1333 = vmatpush1.msra.mxu0 0.0
    %1334 = vmatprep.subr.mxu0 0.0
    %1335 = vmatpush1.msra.mxu0 0.0
    %1336 = vmatprep.subr.mxu0 0.0
    %1337 = vmatpush1.msra.mxu0 0.0
    %1338 = vmatprep.subr.mxu0 0.0
    %1339 = vmatpush1.msra.mxu0 0.0
    %1340 = vmatprep.subr.mxu0 0.0
    %1341 = vmatpush1.msra.mxu0 0.0
    %1342 = vmatprep.subr.mxu0 0.0
    %1343 = vmatpush1.msra.mxu0 0.0
    %1344 = vmatprep.subr.mxu0 0.0
    %1345 = vmatpush1.msra.mxu0 0.0
    %1346 = vmatprep.subr.mxu0 0.0
    %1347 = vmatpush1.msra.mxu0 0.0
    %1348 = vmatprep.subr.mxu0 0.0
    %1349 = vmatpush1.msra.mxu0 0.0
    %1350 = vmatprep.subr.mxu0 0.0
    %1351 = vmatpush1.msra.mxu0 0.0
    %1352 = vmatprep.subr.mxu0 0.0
    %1353 = vmatpush1.msra.mxu0 0.0
    %1354 = vmatprep.subr.mxu0 0.0
    %1355 = vmatpush1.msra.mxu0 0.0
    %1356 = vmatprep.subr.mxu0 0.0
    %1357 = vmatpush1.msra.mxu0 0.0
    %1358 = vmatprep.subr.mxu0 0.0
    %1359 = vmatpush1.msra.mxu0 0.0
    %1360 = vmatprep.subr.mxu0 0.0
    %1361 = vmatpush1.msra.mxu0 0.0
    %1362 = vmatprep.subr.mxu0 0.0
    %1363 = vmatpush1.msra.mxu0 0.0
    %1364 = vmatprep.subr.mxu0 0.0
    %1365 = vmatpush1.msra.mxu0 0.0
    %1366 = vmatprep.subr.mxu0 0.0
    %1367 = vmatpush1.msra.mxu0 0.0
    %1368 = vmatprep.subr.mxu0 0.0
    %1369 = vmatpush1.msra.mxu0 0.0
    %1370 = vmatprep.subr.mxu0 0.0
    %1371 = vmatpush1.msra.mxu0 0.0
    %1372 = vmatprep.subr.mxu0 0.0
    %1373 = vmatpush1.msra.mxu0 0.0
    %1374 = vmatprep.mubr.f32.mxu0 0.0
    %1375 = vmatmul.mubr.f32.gmra.mrb[0].mxu0 %v1308
    %v1376 = vpop.f32.mrb[0].mxu0
    %v1377 = vadd.f32 0.0, %v1376
    %v1378 = vpop.f32.mrb[0].mxu0
    %1379 = vdwg.mxu0
    %v1381 = vsel %vm999, %v1084, 0
    %1383 = vmatprep.subr.mxu0 0.0
    %1384 = vmatpush1.msra.mxu0 %v347
    %1385 = vmatprep.subr.mxu0 0.0
    %1386 = vmatpush1.msra.mxu0 0.0
    %1387 = vmatprep.subr.mxu0 0.0
    %1388 = vmatpush1.msra.mxu0 0.0
    %1389 = vmatprep.subr.mxu0 0.0
    %1390 = vmatpush1.msra.mxu0 0.0
    %1391 = vmatprep.subr.mxu0 0.0
    %1392 = vmatpush1.msra.mxu0 0.0
    %1393 = vmatprep.subr.mxu0 0.0
    %1394 = vmatpush1.msra.mxu0 0.0
    %1395 = vmatprep.subr.mxu0 0.0
    %1396 = vmatpush1.msra.mxu0 0.0
    %1397 = vmatprep.subr.mxu0 0.0
    %1398 = vmatpush1.msra.mxu0 0.0
    %1399 = vmatprep.subr.mxu0 0.0
    %1400 = vmatpush1.msra.mxu0 0.0
    %1401 = vmatprep.subr.mxu0 0.0
    %1402 = vmatpush1.msra.mxu0 0.0
    %1403 = vmatprep.subr.mxu0 0.0
    %1404 = vmatpush1.msra.mxu0 0.0
    %1405 = vmatprep.subr.mxu0 0.0
    %1406 = vmatpush1.msra.mxu0 0.0
    %1407 = vmatprep.subr.mxu0 0.0
    %1408 = vmatpush1.msra.mxu0 0.0
    %1409 = vmatprep.subr.mxu0 0.0
    %1410 = vmatpush1.msra.mxu0 0.0
    %1411 = vmatprep.subr.mxu0 0.0
    %1412 = vmatpush1.msra.mxu0 0.0
    %1413 = vmatprep.subr.mxu0 0.0
    %1414 = vmatpush1.msra.mxu0 0.0
    %1415 = vmatprep.subr.mxu0 0.0
    %1416 = vmatpush1.msra.mxu0 0.0
    %1417 = vmatprep.subr.mxu0 0.0
    %1418 = vmatpush1.msra.mxu0 0.0
    %1419 = vmatprep.subr.mxu0 0.0
    %1420 = vmatpush1.msra.mxu0 0.0
    %1421 = vmatprep.subr.mxu0 0.0
    %1422 = vmatpush1.msra.mxu0 0.0
    %1423 = vmatprep.subr.mxu0 0.0
    %1424 = vmatpush1.msra.mxu0 0.0
    %1425 = vmatprep.subr.mxu0 0.0
    %1426 = vmatpush1.msra.mxu0 0.0
    %1427 = vmatprep.subr.mxu0 0.0
    %1428 = vmatpush1.msra.mxu0 0.0
    %1429 = vmatprep.subr.mxu0 0.0
    %1430 = vmatpush1.msra.mxu0 0.0
    %1431 = vmatprep.subr.mxu0 0.0
    %1432 = vmatpush1.msra.mxu0 0.0
    %1433 = vmatprep.subr.mxu0 0.0
    %1434 = vmatpush1.msra.mxu0 0.0
    %1435 = vmatprep.subr.mxu0 0.0
    %1436 = vmatpush1.msra.mxu0 0.0
    %1437 = vmatprep.subr.mxu0 0.0
    %1438 = vmatpush1.msra.mxu0 0.0
    %1439 = vmatprep.subr.mxu0 0.0
    %1440 = vmatpush1.msra.mxu0 0.0
    %1441 = vmatprep.subr.mxu0 0.0
    %1442 = vmatpush1.msra.mxu0 0.0
    %1443 = vmatprep.subr.mxu0 0.0
    %1444 = vmatpush1.msra.mxu0 0.0
    %1445 = vmatprep.subr.mxu0 0.0
    %1446 = vmatpush1.msra.mxu0 0.0
    %1447 = vmatprep.mubr.f32.mxu0 0.0
    %1448 = vmatmul.mubr.f32.gmra.mrb[0].mxu0 %v1381
    %v1449 = vpop.f32.mrb[0].mxu0
    %v1450 = vadd.f32 0.0, %v1449
    %v1451 = vpop.f32.mrb[0].mxu0
    %1452 = vdwg.mxu0
    %v1454 = vsel %vm999, %v1085, 0
    %1456 = vmatprep.subr.mxu0 0.0
    %1457 = vmatpush1.msra.mxu0 %v390
    %1458 = vmatprep.subr.mxu0 0.0
    %1459 = vmatpush1.msra.mxu0 0.0
    %1460 = vmatprep.subr.mxu0 0.0
    %1461 = vmatpush1.msra.mxu0 0.0
    %1462 = vmatprep.subr.mxu0 0.0
    %1463 = vmatpush1.msra.mxu0 0.0
    %1464 = vmatprep.subr.mxu0 0.0
    %1465 = vmatpush1.msra.mxu0 0.0
    %1466 = vmatprep.subr.mxu0 0.0
    %1467 = vmatpush1.msra.mxu0 0.0
    %1468 = vmatprep.subr.mxu0 0.0
    %1469 = vmatpush1.msra.mxu0 0.0
    %1470 = vmatprep.subr.mxu0 0.0
    %1471 = vmatpush1.msra.mxu0 0.0
    %1472 = vmatprep.subr.mxu0 0.0
    %1473 = vmatpush1.msra.mxu0 0.0
    %1474 = vmatprep.subr.mxu0 0.0
    %1475 = vmatpush1.msra.mxu0 0.0
    %1476 = vmatprep.subr.mxu0 0.0
    %1477 = vmatpush1.msra.mxu0 0.0
    %1478 = vmatprep.subr.mxu0 0.0
    %1479 = vmatpush1.msra.mxu0 0.0
    %1480 = vmatprep.subr.mxu0 0.0
    %1481 = vmatpush1.msra.mxu0 0.0
    %1482 = vmatprep.subr.mxu0 0.0
    %1483 = vmatpush1.msra.mxu0 0.0
    %1484 = vmatprep.subr.mxu0 0.0
    %1485 = vmatpush1.msra.mxu0 0.0
    %1486 = vmatprep.subr.mxu0 0.0
    %1487 = vmatpush1.msra.mxu0 0.0
    %1488 = vmatprep.subr.mxu0 0.0
    %1489 = vmatpush1.msra.mxu0 0.0
    %1490 = vmatprep.subr.mxu0 0.0
    %1491 = vmatpush1.msra.mxu0 0.0
    %1492 = vmatprep.subr.mxu0 0.0
    %1493 = vmatpush1.msra.mxu0 0.0
    %1494 = vmatprep.subr.mxu0 0.0
    %1495 = vmatpush1.msra.mxu0 0.0
    %1496 = vmatprep.subr.mxu0 0.0
    %1497 = vmatpush1.msra.mxu0 0.0
    %1498 = vmatprep.subr.mxu0 0.0
    %1499 = vmatpush1.msra.mxu0 0.0
    %1500 = vmatprep.subr.mxu0 0.0
    %1501 = vmatpush1.msra.mxu0 0.0
    %1502 = vmatprep.subr.mxu0 0.0
    %1503 = vmatpush1.msra.mxu0 0.0
    %1504 = vmatprep.subr.mxu0 0.0
    %1505 = vmatpush1.msra.mxu0 0.0
    %1506 = vmatprep.subr.mxu0 0.0
    %1507 = vmatpush1.msra.mxu0 0.0
    %1508 = vmatprep.subr.mxu0 0.0
    %1509 = vmatpush1.msra.mxu0 0.0
    %1510 = vmatprep.subr.mxu0 0.0
    %1511 = vmatpush1.msra.mxu0 0.0
    %1512 = vmatprep.subr.mxu0 0.0
    %1513 = vmatpush1.msra.mxu0 0.0
    %1514 = vmatprep.subr.mxu0 0.0
    %1515 = vmatpush1.msra.mxu0 0.0
    %1516 = vmatprep.subr.mxu0 0.0
    %1517 = vmatpush1.msra.mxu0 0.0
    %1518 = vmatprep.subr.mxu0 0.0
    %1519 = vmatpush1.msra.mxu0 0.0
    %1520 = vmatprep.mubr.f32.mxu0 0.0
    %1521 = vmatmul.mubr.f32.gmra.mrb[0].mxu0 %v1454
    %v1522 = vpop.f32.mrb[0].mxu0
    %v1523 = vadd.f32 0.0, %v1522
    %v1524 = vpop.f32.mrb[0].mxu0
    %1525 = vdwg.mxu0
    %v1527 = vsel %vm999, %v1086, 0
    %1529 = vmatprep.subr.mxu0 0.0
    %1530 = vmatpush1.msra.mxu0 %v393
    %1531 = vmatprep.subr.mxu0 0.0
    %1532 = vmatpush1.msra.mxu0 0.0
    %1533 = vmatprep.subr.mxu0 0.0
    %1534 = vmatpush1.msra.mxu0 0.0
    %1535 = vmatprep.subr.mxu0 0.0
    %1536 = vmatpush1.msra.mxu0 0.0
    %1537 = vmatprep.subr.mxu0 0.0
    %1538 = vmatpush1.msra.mxu0 0.0
    %1539 = vmatprep.subr.mxu0 0.0
    %1540 = vmatpush1.msra.mxu0 0.0
    %1541 = vmatprep.subr.mxu0 0.0
    %1542 = vmatpush1.msra.mxu0 0.0
    %1543 = vmatprep.subr.mxu0 0.0
    %1544 = vmatpush1.msra.mxu0 0.0
    %1545 = vmatprep.subr.mxu0 0.0
    %1546 = vmatpush1.msra.mxu0 0.0
    %1547 = vmatprep.subr.mxu0 0.0
    %1548 = vmatpush1.msra.mxu0 0.0
    %1549 = vmatprep.subr.mxu0 0.0
    %1550 = vmatpush1.msra.mxu0 0.0
    %1551 = vmatprep.subr.mxu0 0.0
    %1552 = vmatpush1.msra.mxu0 0.0
    %1553 = vmatprep.subr.mxu0 0.0
    %1554 = vmatpush1.msra.mxu0 0.0
    %1555 = vmatprep.subr.mxu0 0.0
    %1556 = vmatpush1.msra.mxu0 0.0
    %1557 = vmatprep.subr.mxu0 0.0
    %1558 = vmatpush1.msra.mxu0 0.0
    %1559 = vmatprep.subr.mxu0 0.0
    %1560 = vmatpush1.msra.mxu0 0.0
    %1561 = vmatprep.subr.mxu0 0.0
    %1562 = vmatpush1.msra.mxu0 0.0
    %1563 = vmatprep.subr.mxu0 0.0
    %1564 = vmatpush1.msra.mxu0 0.0
    %1565 = vmatprep.subr.mxu0 0.0
    %1566 = vmatpush1.msra.mxu0 0.0
    %1567 = vmatprep.subr.mxu0 0.0
    %1568 = vmatpush1.msra.mxu0 0.0
    %1569 = vmatprep.subr.mxu0 0.0
    %1570 = vmatpush1.msra.mxu0 0.0
    %1571 = vmatprep.subr.mxu0 0.0
    %1572 = vmatpush1.msra.mxu0 0.0
    %1573 = vmatprep.subr.mxu0 0.0
    %1574 = vmatpush1.msra.mxu0 0.0
    %1575 = vmatprep.subr.mxu0 0.0
    %1576 = vmatpush1.msra.mxu0 0.0
    %1577 = vmatprep.subr.mxu0 0.0
    %1578 = vmatpush1.msra.mxu0 0.0
    %1579 = vmatprep.subr.mxu0 0.0
    %1580 = vmatpush1.msra.mxu0 0.0
    %1581 = vmatprep.subr.mxu0 0.0
    %1582 = vmatpush1.msra.mxu0 0.0
    %1583 = vmatprep.subr.mxu0 0.0
    %1584 = vmatpush1.msra.mxu0 0.0
    %1585 = vmatprep.subr.mxu0 0.0
    %1586 = vmatpush1.msra.mxu0 0.0
    %1587 = vmatprep.subr.mxu0 0.0
    %1588 = vmatpush1.msra.mxu0 0.0
    %1589 = vmatprep.subr.mxu0 0.0
    %1590 = vmatpush1.msra.mxu0 0.0
    %1591 = vmatprep.subr.mxu0 0.0
    %1592 = vmatpush1.msra.mxu0 0.0
    %1593 = vmatprep.mubr.f32.mxu0 0.0
    %1594 = vmatmul.mubr.f32.gmra.mrb[0].mxu0 %v1527
    %v1595 = vpop.f32.mrb[0].mxu0
    %v1596 = vadd.f32 0.0, %v1595
    %v1597 = vpop.f32.mrb[0].mxu0
    %1598 = vdwg.mxu0
    %v1600 = vsel %vm999, %v1087, 0
    %1602 = vmatprep.subr.mxu0 0.0
    %1603 = vmatpush1.msra.mxu0 %v396
    %1604 = vmatprep.subr.mxu0 0.0
    %1605 = vmatpush1.msra.mxu0 0.0
    %1606 = vmatprep.subr.mxu0 0.0
    %1607 = vmatpush1.msra.mxu0 0.0
    %1608 = vmatprep.subr.mxu0 0.0
    %1609 = vmatpush1.msra.mxu0 0.0
    %1610 = vmatprep.subr.mxu0 0.0
    %1611 = vmatpush1.msra.mxu0 0.0
    %1612 = vmatprep.subr.mxu0 0.0
    %1613 = vmatpush1.msra.mxu0 0.0
    %1614 = vmatprep.subr.mxu0 0.0
    %1615 = vmatpush1.msra.mxu0 0.0
    %1616 = vmatprep.subr.mxu0 0.0
    %1617 = vmatpush1.msra.mxu0 0.0
    %1618 = vmatprep.subr.mxu0 0.0
    %1619 = vmatpush1.msra.mxu0 0.0
    %1620 = vmatprep.subr.mxu0 0.0
    %1621 = vmatpush1.msra.mxu0 0.0
    %1622 = vmatprep.subr.mxu0 0.0
    %1623 = vmatpush1.msra.mxu0 0.0
    %1624 = vmatprep.subr.mxu0 0.0
    %1625 = vmatpush1.msra.mxu0 0.0
    %1626 = vmatprep.subr.mxu0 0.0
    %1627 = vmatpush1.msra.mxu0 0.0
    %1628 = vmatprep.subr.mxu0 0.0
    %1629 = vmatpush1.msra.mxu0 0.0
    %1630 = vmatprep.subr.mxu0 0.0
    %1631 = vmatpush1.msra.mxu0 0.0
    %1632 = vmatprep.subr.mxu0 0.0
    %1633 = vmatpush1.msra.mxu0 0.0
    %1634 = vmatprep.subr.mxu0 0.0
    %1635 = vmatpush1.msra.mxu0 0.0
    %1636 = vmatprep.subr.mxu0 0.0
    %1637 = vmatpush1.msra.mxu0 0.0
    %1638 = vmatprep.subr.mxu0 0.0
    %1639 = vmatpush1.msra.mxu0 0.0
    %1640 = vmatprep.subr.mxu0 0.0
    %1641 = vmatpush1.msra.mxu0 0.0
    %1642 = vmatprep.subr.mxu0 0.0
    %1643 = vmatpush1.msra.mxu0 0.0
    %1644 = vmatprep.subr.mxu0 0.0
    %1645 = vmatpush1.msra.mxu0 0.0
    %1646 = vmatprep.subr.mxu0 0.0
    %1647 = vmatpush1.msra.mxu0 0.0
    %1648 = vmatprep.subr.mxu0 0.0
    %1649 = vmatpush1.msra.mxu0 0.0
    %1650 = vmatprep.subr.mxu0 0.0
    %1651 = vmatpush1.msra.mxu0 0.0
    %1652 = vmatprep.subr.mxu0 0.0
    %1653 = vmatpush1.msra.mxu0 0.0
    %1654 = vmatprep.subr.mxu0 0.0
    %1655 = vmatpush1.msra.mxu0 0.0
    %1656 = vmatprep.subr.mxu0 0.0
    %1657 = vmatpush1.msra.mxu0 0.0
    %1658 = vmatprep.subr.mxu0 0.0
    %1659 = vmatpush1.msra.mxu0 0.0
    %1660 = vmatprep.subr.mxu0 0.0
    %1661 = vmatpush1.msra.mxu0 0.0
    %1662 = vmatprep.subr.mxu0 0.0
    %1663 = vmatpush1.msra.mxu0 0.0
    %1664 = vmatprep.subr.mxu0 0.0
    %1665 = vmatpush1.msra.mxu0 0.0
    %1666 = vmatprep.mubr.f32.mxu0 0.0
    %1667 = vmatmul.mubr.f32.gmra.mrb[0].mxu0 %v1600
    %v1668 = vpop.f32.mrb[0].mxu0
    %v1669 = vadd.f32 0.0, %v1668
    %v1670 = vpop.f32.mrb[0].mxu0
    %1671 = vdwg.mxu0
    %1673 = vrot.lane.b32.xlu0 %v1231, 32
    %v1674 = vpop.permute.xlu0 %1673
    %1677 = vrot.lane.b32.xlu0 %v1304, 64
    %v1678 = vpop.permute.xlu0 %1677
    %1681 = vrot.lane.b32.xlu0 %v1377, 96
    %v1682 = vpop.permute.xlu0 %1681
    %v1684 = vsel %vm406, %v1158, %v1674
    %vm1685 = vcmask 523264
    %v1686 = vsel %vm1685, %v1684, %v1678
    %vm1687 = vcmask 785408
    %v1688 = vsel %vm1687, %v1686, %v1682
    %1690 = vrot.lane.b32.xlu0 %v1523, 32
    %v1691 = vpop.permute.xlu0 %1690
    %1694 = vrot.lane.b32.xlu0 %v1596, 64
    %v1695 = vpop.permute.xlu0 %1694
    %1698 = vrot.lane.b32.xlu0 %v1669, 96
    %v1699 = vpop.permute.xlu0 %1698
    %v1701 = vsel %vm406, %v1450, %v1691
    %v1702 = vsel %vm1685, %v1701, %v1695
    %v1703 = vsel %vm1687, %v1702, %v1699
    %v1704 = vld [vmem:[#allocation8] sm:$0xff]
    %v1705 = vld [vmem:[#allocation8 + $0x8] sm:$0xff]
    %v1706 = vld [vmem:[#allocation8 + $0x10] sm:$0xff]
    %v1707 = vld [vmem:[#allocation8 + $0x18] sm:$0xff]
    %v1708 = vld [vmem:[#allocation8 + $0x20] sm:$0xff]
    %v1709 = vld [vmem:[#allocation8 + $0x28] sm:$0xff]
    %v1710 = vld [vmem:[#allocation8 + $0x30] sm:$0xff]
    %v1711 = vld [vmem:[#allocation8 + $0x38] sm:$0xff]
    %v1712 = vld [vmem:[#allocation8 + $0x40] sm:$0xff]
    %v1713 = vld [vmem:[#allocation8 + $0x48] sm:$0xff]
    %v1714 = vld [vmem:[#allocation8 + $0x50] sm:$0xff]
    %v1715 = vld [vmem:[#allocation8 + $0x58] sm:$0xff]
    %v1716 = vld [vmem:[#allocation8 + $0x60] sm:$0xff]
    %v1717 = vld [vmem:[#allocation8 + $0x68] sm:$0xff]
    %v1718 = vld [vmem:[#allocation8 + $0x70] sm:$0xff]
    %v1719 = vld [vmem:[#allocation8 + $0x78] sm:$0xff]
    %v1720 = vlaneseq
    %v1721 = vshrl.u32 %v1720, 7
    %v1722 = vsub.s32 0, %v1721
    %v1723 = vrot.slane %v132, %v1722
    %1724 = vmatprep.subr.mxu0 0.0
    %1725 = vmatpush1.msra.mxu0 %v1704
    %1726 = vmatprep.subr.mxu0 0.0
    %1727 = vmatpush1.msra.mxu0 %v1705
    %1728 = vmatprep.subr.mxu0 0.0
    %1729 = vmatpush1.msra.mxu0 %v1706
    %1730 = vmatprep.subr.mxu0 0.0
    %1731 = vmatpush1.msra.mxu0 %v1707
    %1732 = vmatprep.subr.mxu0 0.0
    %1733 = vmatpush1.msra.mxu0 %v1708
    %1734 = vmatprep.subr.mxu0 0.0
    %1735 = vmatpush1.msra.mxu0 %v1709
    %1736 = vmatprep.subr.mxu0 0.0
    %1737 = vmatpush1.msra.mxu0 %v1710
    %1738 = vmatprep.subr.mxu0 0.0
    %1739 = vmatpush1.msra.mxu0 %v1711
    %1740 = vmatprep.subr.mxu0 0.0
    %1741 = vmatpush1.msra.mxu0 %v1712
    %1742 = vmatprep.subr.mxu0 0.0
    %1743 = vmatpush1.msra.mxu0 %v1713
    %1744 = vmatprep.subr.mxu0 0.0
    %1745 = vmatpush1.msra.mxu0 %v1714
    %1746 = vmatprep.subr.mxu0 0.0
    %1747 = vmatpush1.msra.mxu0 %v1715
    %1748 = vmatprep.subr.mxu0 0.0
    %1749 = vmatpush1.msra.mxu0 %v1716
    %1750 = vmatprep.subr.mxu0 0.0
    %1751 = vmatpush1.msra.mxu0 %v1717
    %1752 = vmatprep.subr.mxu0 0.0
    %1753 = vmatpush1.msra.mxu0 %v1718
    %1754 = vmatprep.subr.mxu0 0.0
    %1755 = vmatpush1.msra.mxu0 %v1719
    %1756 = vmatprep.subr.mxu0 0.0
    %1757 = vmatpush1.msra.mxu0 0.0
    %1758 = vmatprep.subr.mxu0 0.0
    %1759 = vmatpush1.msra.mxu0 0.0
    %1760 = vmatprep.subr.mxu0 0.0
    %1761 = vmatpush1.msra.mxu0 0.0
    %1762 = vmatprep.subr.mxu0 0.0
    %1763 = vmatpush1.msra.mxu0 0.0
    %1764 = vmatprep.subr.mxu0 0.0
    %1765 = vmatpush1.msra.mxu0 0.0
    %1766 = vmatprep.subr.mxu0 0.0
    %1767 = vmatpush1.msra.mxu0 0.0
    %1768 = vmatprep.subr.mxu0 0.0
    %1769 = vmatpush1.msra.mxu0 0.0
    %1770 = vmatprep.subr.mxu0 0.0
    %1771 = vmatpush1.msra.mxu0 0.0
    %1772 = vmatprep.subr.mxu0 0.0
    %1773 = vmatpush1.msra.mxu0 0.0
    %1774 = vmatprep.subr.mxu0 0.0
    %1775 = vmatpush1.msra.mxu0 0.0
    %1776 = vmatprep.subr.mxu0 0.0
    %1777 = vmatpush1.msra.mxu0 0.0
    %1778 = vmatprep.subr.mxu0 0.0
    %1779 = vmatpush1.msra.mxu0 0.0
    %1780 = vmatprep.subr.mxu0 0.0
    %1781 = vmatpush1.msra.mxu0 0.0
    %1782 = vmatprep.subr.mxu0 0.0
    %1783 = vmatpush1.msra.mxu0 0.0
    %1784 = vmatprep.subr.mxu0 0.0
    %1785 = vmatpush1.msra.mxu0 0.0
    %1786 = vmatprep.subr.mxu0 0.0
    %1787 = vmatpush1.msra.mxu0 0.0
    %1788 = vmatprep.mubr.f32.mxu0 0.0
    %1789 = vmatmul.mubr.f32.gmra.mrb[0].mxu0 %v1688
    %v1790 = vpop.f32.mrb[0].mxu0
    %v1791 = vadd.f32 %v1723, %v1790
    %v1792 = vpop.f32.mrb[0].mxu0
    %1793 = vmatprep.mubr.f32.mxu0 0.0
    %1794 = vmatmul.mubr.f32.gmra.mrb[0].mxu0 %v1703
    %v1795 = vpop.f32.mrb[0].mxu0
    %v1796 = vadd.f32 %v1723, %v1795
    %v1797 = vpop.f32.mrb[0].mxu0
    %1798 = vdwg.mxu0
    %v1799 = vadd.f32 %v115, %v1791
    %v1800 = vadd.f32 %v130, %v1796
    %1801 = vadd.xlane.f32.xlu0 %v1799
    %v1802 = vpop.xlane.xlu0 %1801
    %1803 = vadd.xlane.f32.xlu0 %v1800
    %v1804 = vpop.xlane.xlu0 %1803
    %v1805 = vrcp.pop 128.0
    %v1806 = vmul.f32 %v1802, %v1805
    %v1807 = vmul.f32 %v1804, %v1805
    %v1808 = vsub.f32 %v1799, %v1806
    %v1809 = vsub.f32 %v1800, %v1807
    %v1810 = vmul.f32 %v1808, %v1808
    %v1811 = vmul.f32 %v1809, %v1809
    %1812 = vadd.xlane.f32.xlu0 %v1810
    %v1813 = vpop.xlane.xlu0 %1812
    %1814 = vadd.xlane.f32.xlu0 %v1811
    %v1815 = vpop.xlane.xlu0 %1814
    %v1816 = vmul.f32 %v1813, %v1805
    %v1817 = vmul.f32 %v1815, %v1805
    %v1818 = vadd.f32 %v1816, 1e-05
    %v1819 = vadd.f32 %v1817, 1e-05
    %v1820 = vrsqrt.pop %v1818
    %v1821 = vrsqrt.pop %v1819
    %v1822 = vmul.f32 %v1808, %v1820
    %v1823 = vmul.f32 %v1809, %v1821
    %v1824 = vlaneseq
    %v1825 = vshrl.u32 %v1824, 7
    %v1826 = vsub.s32 3, %v1825
    %v1827 = vrot.slane %v132, %v1826
    %v1828 = vmul.f32 %v1822, %v1827
    %v1829 = vmul.f32 %v1823, %v1827
    %v1830 = vlaneseq
    %v1831 = vshrl.u32 %v1830, 7
    %v1832 = vsub.s32 4, %v1831
    %v1833 = vrot.slane %v132, %v1832
    %v1834 = vadd.f32 %v1828, %v1833
    %v1835 = vadd.f32 %v1829, %v1833
    %s1836 = scalar_lea.vmem [#allocation8], 128
    %v1837 = vld [vmem:[%s1836] sm:$0xff]
    %v1838 = vld [vmem:[%s1836 + $0x8] sm:$0xff]
    %v1839 = vld [vmem:[%s1836 + $0x10] sm:$0xff]
    %v1840 = vld [vmem:[%s1836 + $0x18] sm:$0xff]
    %v1841 = vld [vmem:[%s1836 + $0x20] sm:$0xff]
    %v1842 = vld [vmem:[%s1836 + $0x28] sm:$0xff]
    %v1843 = vld [vmem:[%s1836 + $0x30] sm:$0xff]
    %v1844 = vld [vmem:[%s1836 + $0x38] sm:$0xff]
    %v1845 = vld [vmem:[%s1836 + $0x40] sm:$0xff]
    %v1846 = vld [vmem:[%s1836 + $0x48] sm:$0xff]
    %v1847 = vld [vmem:[%s1836 + $0x50] sm:$0xff]
    %v1848 = vld [vmem:[%s1836 + $0x58] sm:$0xff]
    %v1849 = vld [vmem:[%s1836 + $0x60] sm:$0xff]
    %v1850 = vld [vmem:[%s1836 + $0x68] sm:$0xff]
    %v1851 = vld [vmem:[%s1836 + $0x70] sm:$0xff]
    %v1852 = vld [vmem:[%s1836 + $0x78] sm:$0xff]
    %v1853 = vlaneseq
    %v1854 = vshrl.u32 %v1853, 7
    %v1855 = vsub.s32 1, %v1854
    %v1856 = vrot.slane %v132, %v1855
    %1857 = vmatprep.subr.mxu0 0.0
    %1858 = vmatpush1.msra.mxu0 %v1837
    %1859 = vmatprep.subr.mxu0 0.0
    %1860 = vmatpush1.msra.mxu0 %v1838
    %1861 = vmatprep.subr.mxu0 0.0
    %1862 = vmatpush1.msra.mxu0 %v1839
    %1863 = vmatprep.subr.mxu0 0.0
    %1864 = vmatpush1.msra.mxu0 %v1840
    %1865 = vmatprep.subr.mxu0 0.0
    %1866 = vmatpush1.msra.mxu0 %v1841
    %1867 = vmatprep.subr.mxu0 0.0
    %1868 = vmatpush1.msra.mxu0 %v1842
    %1869 = vmatprep.subr.mxu0 0.0
    %1870 = vmatpush1.msra.mxu0 %v1843
    %1871 = vmatprep.subr.mxu0 0.0
    %1872 = vmatpush1.msra.mxu0 %v1844
    %1873 = vmatprep.subr.mxu0 0.0
    %1874 = vmatpush1.msra.mxu0 %v1845
    %1875 = vmatprep.subr.mxu0 0.0
    %1876 = vmatpush1.msra.mxu0 %v1846
    %1877 = vmatprep.subr.mxu0 0.0
    %1878 = vmatpush1.msra.mxu0 %v1847
    %1879 = vmatprep.subr.mxu0 0.0
    %1880 = vmatpush1.msra.mxu0 %v1848
    %1881 = vmatprep.subr.mxu0 0.0
    %1882 = vmatpush1.msra.mxu0 %v1849
    %1883 = vmatprep.subr.mxu0 0.0
    %1884 = vmatpush1.msra.mxu0 %v1850
    %1885 = vmatprep.subr.mxu0 0.0
    %1886 = vmatpush1.msra.mxu0 %v1851
    %1887 = vmatprep.subr.mxu0 0.0
    %1888 = vmatpush1.msra.mxu0 %v1852
    %1889 = vmatprep.subr.mxu0 0.0
    %1890 = vmatpush1.msra.mxu0 0.0
    %1891 = vmatprep.subr.mxu0 0.0
    %1892 = vmatpush1.msra.mxu0 0.0
    %1893 = vmatprep.subr.mxu0 0.0
    %1894 = vmatpush1.msra.mxu0 0.0
    %1895 = vmatprep.subr.mxu0 0.0
    %1896 = vmatpush1.msra.mxu0 0.0
    %1897 = vmatprep.subr.mxu0 0.0
    %1898 = vmatpush1.msra.mxu0 0.0
    %1899 = vmatprep.subr.mxu0 0.0
    %1900 = vmatpush1.msra.mxu0 0.0
    %1901 = vmatprep.subr.mxu0 0.0
    %1902 = vmatpush1.msra.mxu0 0.0
    %1903 = vmatprep.subr.mxu0 0.0
    %1904 = vmatpush1.msra.mxu0 0.0
    %1905 = vmatprep.subr.mxu0 0.0
    %1906 = vmatpush1.msra.mxu0 0.0
    %1907 = vmatprep.subr.mxu0 0.0
    %1908 = vmatpush1.msra.mxu0 0.0
    %1909 = vmatprep.subr.mxu0 0.0
    %1910 = vmatpush1.msra.mxu0 0.0
    %1911 = vmatprep.subr.mxu0 0.0
    %1912 = vmatpush1.msra.mxu0 0.0
    %1913 = vmatprep.subr.mxu0 0.0
    %1914 = vmatpush1.msra.mxu0 0.0
    %1915 = vmatprep.subr.mxu0 0.0
    %1916 = vmatpush1.msra.mxu0 0.0
    %1917 = vmatprep.subr.mxu0 0.0
    %1918 = vmatpush1.msra.mxu0 0.0
    %1919 = vmatprep.subr.mxu0 0.0
    %1920 = vmatpush1.msra.mxu0 0.0
    %1921 = vmatprep.mubr.f32.mxu0 0.0
    %1922 = vmatmul.mubr.f32.gmra.mrb[0].mxu0 %v1834
    %v1923 = vpop.f32.mrb[0].mxu0
    %v1924 = vadd.f32 %v1856, %v1923
    %v1925 = vpop.f32.mrb[0].mxu0
    %1926 = vmatprep.mubr.f32.mxu0 0.0
    %1927 = vmatmul.mubr.f32.gmra.mrb[0].mxu0 %v1835
    %v1928 = vpop.f32.mrb[0].mxu0
    %v1929 = vadd.f32 %v1856, %v1928
    %v1930 = vpop.f32.mrb[0].mxu0
    %1931 = vdwg.mxu0
    %v1932 = vmul.f32 %v1924, %v1924
    %v1933 = vmul.f32 %v1929, %v1929
    %v1934 = vmul.f32 %v1924, %v1932
    %v1935 = vmul.f32 %v1929, %v1933
    %v1936 = vmul.f32 %v1934, 0.044715
    %v1937 = vmul.f32 %v1935, 0.044715
    %v1938 = vadd.f32 %v1924, %v1936
    %v1939 = vadd.f32 %v1929, %v1937
    %v1940 = vmul.f32 %v1938, 0.7978846
    %v1941 = vmul.f32 %v1939, 0.7978846
    %v1942 = vtanh.pop %v1940
    %v1943 = vtanh.pop %v1941
    %v1944 = vadd.f32 %v1942, 1.0
    %v1945 = vadd.f32 %v1943, 1.0
    %v1946 = vmul.f32 %v1944, 0.5
    %v1947 = vmul.f32 %v1945, 0.5
    %v1948 = vmul.f32 %v1924, %v1946
    %v1949 = vmul.f32 %v1929, %v1947
    %s1950 = scalar_lea.vmem [#allocation8], 256
    %v1951 = vld [vmem:[%s1950] sm:$0xff]
    %v1952 = vld [vmem:[%s1950 + $0x8] sm:$0xff]
    %v1953 = vld [vmem:[%s1950 + $0x10] sm:$0xff]
    %v1954 = vld [vmem:[%s1950 + $0x18] sm:$0xff]
    %v1955 = vld [vmem:[%s1950 + $0x20] sm:$0xff]
    %v1956 = vld [vmem:[%s1950 + $0x28] sm:$0xff]
    %v1957 = vld [vmem:[%s1950 + $0x30] sm:$0xff]
    %v1958 = vld [vmem:[%s1950 + $0x38] sm:$0xff]
    %v1959 = vld [vmem:[%s1950 + $0x40] sm:$0xff]
    %v1960 = vld [vmem:[%s1950 + $0x48] sm:$0xff]
    %v1961 = vld [vmem:[%s1950 + $0x50] sm:$0xff]
    %v1962 = vld [vmem:[%s1950 + $0x58] sm:$0xff]
    %v1963 = vld [vmem:[%s1950 + $0x60] sm:$0xff]
    %v1964 = vld [vmem:[%s1950 + $0x68] sm:$0xff]
    %v1965 = vld [vmem:[%s1950 + $0x70] sm:$0xff]
    %v1966 = vld [vmem:[%s1950 + $0x78] sm:$0xff]
    %v1967 = vlaneseq
    %v1968 = vshrl.u32 %v1967, 7
    %v1969 = vsub.s32 2, %v1968
    %v1970 = vrot.slane %v132, %v1969
    %1971 = vmatprep.subr.mxu0 0.0
    %1972 = vmatpush1.msra.mxu0 %v1951
    %1973 = vmatprep.subr.mxu0 0.0
    %1974 = vmatpush1.msra.mxu0 %v1952
    %1975 = vmatprep.subr.mxu0 0.0
    %1976 = vmatpush1.msra.mxu0 %v1953
    %1977 = vmatprep.subr.mxu0 0.0
    %1978 = vmatpush1.msra.mxu0 %v1954
    %1979 = vmatprep.subr.mxu0 0.0
    %1980 = vmatpush1.msra.mxu0 %v1955
    %1981 = vmatprep.subr.mxu0 0.0
    %1982 = vmatpush1.msra.mxu0 %v1956
    %1983 = vmatprep.subr.mxu0 0.0
    %1984 = vmatpush1.msra.mxu0 %v1957
    %1985 = vmatprep.subr.mxu0 0.0
    %1986 = vmatpush1.msra.mxu0 %v1958
    %1987 = vmatprep.subr.mxu0 0.0
    %1988 = vmatpush1.msra.mxu0 %v1959
    %1989 = vmatprep.subr.mxu0 0.0
    %1990 = vmatpush1.msra.mxu0 %v1960
    %1991 = vmatprep.subr.mxu0 0.0
    %1992 = vmatpush1.msra.mxu0 %v1961
    %1993 = vmatprep.subr.mxu0 0.0
    %1994 = vmatpush1.msra.mxu0 %v1962
    %1995 = vmatprep.subr.mxu0 0.0
    %1996 = vmatpush1.msra.mxu0 %v1963
    %1997 = vmatprep.subr.mxu0 0.0
    %1998 = vmatpush1.msra.mxu0 %v1964
    %1999 = vmatprep.subr.mxu0 0.0
    %2000 = vmatpush1.msra.mxu0 %v1965
    %2001 = vmatprep.subr.mxu0 0.0
    %2002 = vmatpush1.msra.mxu0 %v1966
    %2003 = vmatprep.subr.mxu0 0.0
    %2004 = vmatpush1.msra.mxu0 0.0
    %2005 = vmatprep.subr.mxu0 0.0
    %2006 = vmatpush1.msra.mxu0 0.0
    %2007 = vmatprep.subr.mxu0 0.0
    %2008 = vmatpush1.msra.mxu0 0.0
    %2009 = vmatprep.subr.mxu0 0.0
    %2010 = vmatpush1.msra.mxu0 0.0
    %2011 = vmatprep.subr.mxu0 0.0
    %2012 = vmatpush1.msra.mxu0 0.0
    %2013 = vmatprep.subr.mxu0 0.0
    %2014 = vmatpush1.msra.mxu0 0.0
    %2015 = vmatprep.subr.mxu0 0.0
    %2016 = vmatpush1.msra.mxu0 0.0
    %2017 = vmatprep.subr.mxu0 0.0
    %2018 = vmatpush1.msra.mxu0 0.0
    %2019 = vmatprep.subr.mxu0 0.0
    %2020 = vmatpush1.msra.mxu0 0.0
    %2021 = vmatprep.subr.mxu0 0.0
    %2022 = vmatpush1.msra.mxu0 0.0
    %2023 = vmatprep.subr.mxu0 0.0
    %2024 = vmatpush1.msra.mxu0 0.0
    %2025 = vmatprep.subr.mxu0 0.0
    %2026 = vmatpush1.msra.mxu0 0.0
    %2027 = vmatprep.subr.mxu0 0.0
    %2028 = vmatpush1.msra.mxu0 0.0
    %2029 = vmatprep.subr.mxu0 0.0
    %2030 = vmatpush1.msra.mxu0 0.0
    %2031 = vmatprep.subr.mxu0 0.0
    %2032 = vmatpush1.msra.mxu0 0.0
    %2033 = vmatprep.subr.mxu0 0.0
    %2034 = vmatpush1.msra.mxu0 0.0
    %2035 = vmatprep.mubr.f32.mxu0 0.0
    %2036 = vmatmul.mubr.f32.gmra.mrb[0].mxu0 %v1948
    %v2037 = vpop.f32.mrb[0].mxu0
    %v2038 = vadd.f32 %v1970, %v2037
    %v2039 = vpop.f32.mrb[0].mxu0
    %2040 = vmatprep.mubr.f32.mxu0 0.0
    %2041 = vmatmul.mubr.f32.gmra.mrb[0].mxu0 %v1949
    %v2042 = vpop.f32.mrb[0].mxu0
    %v2043 = vadd.f32 %v1970, %v2042
    %v2044 = vpop.f32.mrb[0].mxu0
    %2045 = vdwg.mxu0
    %v2046 = vadd.f32 %v1834, %v2038
    %v2047 = vadd.f32 %v1835, %v2043
    %2048 = vadd.xlane.f32.xlu0 %v2046
    %v2049 = vpop.xlane.xlu0 %2048
    %2050 = vadd.xlane.f32.xlu0 %v2047
    %v2051 = vpop.xlane.xlu0 %2050
    %v2052 = vmul.f32 %v2049, %v1805
    %v2053 = vmul.f32 %v2051, %v1805
    %v2054 = vsub.f32 %v2046, %v2052
    %v2055 = vsub.f32 %v2047, %v2053
    %v2056 = vmul.f32 %v2054, %v2054
    %v2057 = vmul.f32 %v2055, %v2055
    %2058 = vadd.xlane.f32.xlu0 %v2056
    %v2059 = vpop.xlane.xlu0 %2058
    %2060 = vadd.xlane.f32.xlu0 %v2057
    %v2061 = vpop.xlane.xlu0 %2060
    %v2062 = vmul.f32 %v2059, %v1805
    %v2063 = vmul.f32 %v2061, %v1805
    %v2064 = vadd.f32 %v2062, 1e-05
    %v2065 = vadd.f32 %v2063, 1e-05
    %v2066 = vrsqrt.pop %v2064
    %v2067 = vrsqrt.pop %v2065
    %v2068 = vmul.f32 %v2054, %v2066
    %v2069 = vmul.f32 %v2055, %v2067
    %v2070 = vlaneseq
    %v2071 = vshrl.u32 %v2070, 7
    %v2072 = vsub.s32 5, %v2071
    %v2073 = vrot.slane %v132, %v2072
    %v2074 = vmul.f32 %v2068, %v2073
    %v2075 = vmul.f32 %v2069, %v2073
    %v2076 = vlaneseq
    %v2077 = vshrl.u32 %v2076, 7
    %v2078 = vsub.s32 6, %v2077
    %v2079 = vrot.slane %v132, %v2078
    %v2080 = vadd.f32 %v2074, %v2079
    %v2081 = vadd.f32 %v2075, %v2079
    %v2083 = vcombine.high %v2080, %v2080
    %v2085 = vunpack.c.l.s4 1966171168
    %v2086 = vunpack.c.0.s8 %v2085
    %v2087 = vlaneseq
    %v2088 = vshrl.u32 %v2087, 7
    %v2089 = vsub.s32 %v2086, %v2088
    %v2090 = vrot.slane %v2080, %v2089
    %v2092 = vunpack.c.l.s4 1966171168
    %v2093 = vunpack.c.0.s8 %v2092
    %v2094 = vlaneseq
    %v2095 = vshrl.u32 %v2094, 7
    %v2096 = vsub.s32 %v2093, %v2095
    %v2097 = vrot.slane %v2083, %v2096
    %v2098 = vcombine.high %v2090, %v2090
    %v2099 = vcombine.high %v2097, %v2097
    %v2101 = vunpack.c.l.s4 1966171168
    %v2102 = vunpack.c.0.s8 %v2101
    %v2103 = vlaneseq
    %v2104 = vshrl.u32 %v2103, 7
    %v2105 = vsub.s32 %v2102, %v2104
    %v2106 = vrot.slane %v2090, %v2105
    %v2108 = vunpack.c.l.s4 1966171168
    %v2109 = vunpack.c.0.s8 %v2108
    %v2110 = vlaneseq
    %v2111 = vshrl.u32 %v2110, 7
    %v2112 = vsub.s32 %v2109, %v2111
    %v2113 = vrot.slane %v2097, %v2112
    %v2115 = vunpack.c.l.s4 1966171168
    %v2116 = vunpack.c.0.s8 %v2115
    %v2117 = vlaneseq
    %v2118 = vshrl.u32 %v2117, 7
    %v2119 = vsub.s32 %v2116, %v2118
    %v2120 = vrot.slane %v2098, %v2119
    %v2122 = vunpack.c.l.s4 1966171168
    %v2123 = vunpack.c.0.s8 %v2122
    %v2124 = vlaneseq
    %v2125 = vshrl.u32 %v2124, 7
    %v2126 = vsub.s32 %v2123, %v2125
    %v2127 = vrot.slane %v2099, %v2126
    %v2128 = vcombine.high %v2106, %v2106
    %v2129 = vcombine.high %v2113, %v2113
    %v2130 = vcombine.high %v2120, %v2120
    %v2131 = vcombine.high %v2127, %v2127
    %v2141 = vcombine.high %v2081, %v2081
    %v2143 = vunpack.c.l.s4 1966171168
    %v2144 = vunpack.c.0.s8 %v2143
    %v2145 = vlaneseq
    %v2146 = vshrl.u32 %v2145, 7
    %v2147 = vsub.s32 %v2144, %v2146
    %v2148 = vrot.slane %v2081, %v2147
    %v2150 = vunpack.c.l.s4 1966171168
    %v2151 = vunpack.c.0.s8 %v2150
    %v2152 = vlaneseq
    %v2153 = vshrl.u32 %v2152, 7
    %v2154 = vsub.s32 %v2151, %v2153
    %v2155 = vrot.slane %v2141, %v2154
    %v2156 = vcombine.high %v2148, %v2148
    %v2157 = vcombine.high %v2155, %v2155
    %v2159 = vunpack.c.l.s4 1966171168
    %v2160 = vunpack.c.0.s8 %v2159
    %v2161 = vlaneseq
    %v2162 = vshrl.u32 %v2161, 7
    %v2163 = vsub.s32 %v2160, %v2162
    %v2164 = vrot.slane %v2148, %v2163
    %v2166 = vunpack.c.l.s4 1966171168
    %v2167 = vunpack.c.0.s8 %v2166
    %v2168 = vlaneseq
    %v2169 = vshrl.u32 %v2168, 7
    %v2170 = vsub.s32 %v2167, %v2169
    %v2171 = vrot.slane %v2155, %v2170
    %v2173 = vunpack.c.l.s4 1966171168
    %v2174 = vunpack.c.0.s8 %v2173
    %v2175 = vlaneseq
    %v2176 = vshrl.u32 %v2175, 7
    %v2177 = vsub.s32 %v2174, %v2176
    %v2178 = vrot.slane %v2156, %v2177
    %v2180 = vunpack.c.l.s4 1966171168
    %v2181 = vunpack.c.0.s8 %v2180
    %v2182 = vlaneseq
    %v2183 = vshrl.u32 %v2182, 7
    %v2184 = vsub.s32 %v2181, %v2183
    %v2185 = vrot.slane %v2157, %v2184
    %v2186 = vcombine.high %v2164, %v2164
    %v2187 = vcombine.high %v2171, %v2171
    %v2188 = vcombine.high %v2178, %v2178
    %v2189 = vcombine.high %v2185, %v2185
    %v2190 = vlaneseq
    %v2191 = vshrl.u32 %v2190, 7
    %v2192 = vsub.s32 0, %v2191
    %v2193 = vrot.slane %v2164, %v2192
    %v2194 = vlaneseq
    %v2195 = vshrl.u32 %v2194, 7
    %v2196 = vsub.s32 0, %v2195
    %v2197 = vrot.slane %v2178, %v2196
    %v2198 = vlaneseq
    %v2199 = vshrl.u32 %v2198, 7
    %v2200 = vsub.s32 0, %v2199
    %v2201 = vrot.slane %v2186, %v2200
    %v2202 = vlaneseq
    %v2203 = vshrl.u32 %v2202, 7
    %v2204 = vsub.s32 0, %v2203
    %v2205 = vrot.slane %v2188, %v2204
    %v2206 = vlaneseq
    %v2207 = vshrl.u32 %v2206, 7
    %v2208 = vsub.s32 0, %v2207
    %v2209 = vrot.slane %v2171, %v2208
    %v2210 = vlaneseq
    %v2211 = vshrl.u32 %v2210, 7
    %v2212 = vsub.s32 0, %v2211
    %v2213 = vrot.slane %v2185, %v2212
    %v2214 = vlaneseq
    %v2215 = vshrl.u32 %v2214, 7
    %v2216 = vsub.s32 0, %v2215
    %v2217 = vrot.slane %v2187, %v2216
    %v2218 = vlaneseq
    %v2219 = vshrl.u32 %v2218, 7
    %v2220 = vsub.s32 0, %v2219
    %v2221 = vrot.slane %v2189, %v2220
    %vm2230 = vcmask 1040384
    %v2231 = vsel %vm2230, %v2106, %v2193
    %v2232 = vsel %vm2230, %v2120, %v2197
    %v2233 = vsel %vm2230, %v2128, %v2201
    %v2234 = vsel %vm2230, %v2130, %v2205
    %v2235 = vsel %vm2230, %v2113, %v2209
    %v2236 = vsel %vm2230, %v2127, %v2213
    %v2237 = vsel %vm2230, %v2129, %v2217
    %v2238 = vsel %vm2230, %v2131, %v2221
    %2239 = vst [vmem:[#allocation10] sm:$0x3] %v2231
    %2240 = vst [vmem:[#allocation10 + $0x2] sm:$0x3] %v2232
    %2241 = vst [vmem:[#allocation10 + $0x4] sm:$0x3] %v2233
    %2242 = vst [vmem:[#allocation10 + $0x6] sm:$0x3] %v2234
    %2243 = vst [vmem:[#allocation10 + $0x8] sm:$0x3] %v2235
    %2244 = vst [vmem:[#allocation10 + $0xa] sm:$0x3] %v2236
    %2245 = vst [vmem:[#allocation10 + $0xc] sm:$0x3] %v2237
    %2246 = vst [vmem:[#allocation10 + $0xe] sm:$0x3] %v2238
    // Predicated region
    $region42: #{tpu_custom_call.1} parent=1 // pred_check
      _
    $region43: #{tpu_custom_call.1} parent=1 // pred_check_branch
      %2248 = sbr.rel (0) target = $region45
    $region44: #{tpu_custom_call.1} parent=1 // pred_region
      %s2250 = ssub.s32 256, 256
      %2251 = vsyncadd [#allocation4], %s2250
      %s2252 = sshll.u32 [#allocation10], 4
      %s2253 = int_to_ptr.vmem [resolvable:$true] %s2252
      %2258 = dma.vmem_to_hbm [thread:$0]  %s2253, 256, %s6, [#allocation4], 32, 32, 2
    $region45: #{tpu_custom_call.1} parent=1 // pred_fallthru
      _
    // Predicated region
    $region46: #{tpu_custom_call.1} parent=1 // pred_check
      _
    $region47: #{tpu_custom_call.1} parent=1 // pred_check_branch
      %2260 = sbr.rel (0) target = $region49
    $region48: #{tpu_custom_call.1} parent=1 // pred_region
      %2261 = dma.done [#allocation4], 256
    $region49: #{tpu_custom_call.1} parent=1 // pred_fallthru
      _
    %2262 = vsyncpa [#allocation3], 1
    %2263 = vsyncpa [#allocation6], 1
    %2264 = vsyncpa [#allocation9], 1
    %2265 = vsyncpa [#allocation4], 1

</llo_original>
